<compile_context>
chip_gen: v6e
topology: v6e:2x2x1
jax: 0.10.0
libtpu: 0.0.40
codegen_flags: <defaults>
</compile_context>

<pallas_src>
import functools

import jax
import jax.numpy as jnp
from jax.experimental import pallas as pl
from jax.experimental.pallas import tpu as pltpu


def _dual_sep_conv_kernel(xph_ref, rc_ref, dwa_ref, pwa_ref, adda_ref,
                          dwb_ref, pwb_ref, addb_ref, o_ref, *,
                          nb, stride, padding, dilation, kh, kw,
                          ho, wo, hwp, bounds_a):
    """Fused DualSepConv for `nb` batch elements, channel-major flat layout.

    xph_ref:  (nb, stride*stride, C_in, hwp)  polyphase-split, flattened, zero-padded input
    rc_ref:   (2, hwp) int32                  precomputed (row, col) of each flat position
    dwa_ref:  (C_in, kh*kw)  f32              stage-A depthwise weights
    pwa_ref:  (C_mid, C_in)  bf16             stage-A pointwise weights (BN scale folded)
    adda_ref: (C_mid, 1)     f32              stage-A folded add (bias*scale + shift)
    dwb_ref:  (C_mid, kh*kw) f32              stage-B depthwise weights
    pwb_ref:  (C_out, C_mid) bf16             stage-B pointwise weights (BN scale folded)
    addb_ref: (C_out, 1)     f32              stage-B folded add
    o_ref:    (nb, C_out, hwp)                output (lane-dense, unmasked stores)
    """
    row = rc_ref[0:1, :]            # (1, hwp) int32 : q // wo
    col = rc_ref[1:2, :]            # (1, hwp) int32 : q %  wo

    def shifted(v, amt):
        # out[:, q] = v[:, (q + amt) mod hwp]; wrapped lanes are masked off by caller.
        s = (-amt) % hwp
        if s == 0:
            return v
        return pltpu.roll(v, shift=s, axis=1)

    def tap_acc(acc, v, w_col, qr, qc, hb, wb):
        # acc += mask * shift(v) * w ; mask keeps taps falling inside the (hb, wb)
        # valid region of the source grid (implements the conv zero padding).
        contrib = shifted(v, qr * wo + qc) * w_col
        if qr < 0 or qc < 0 or qr + ho > hb or qc + wo > wb:   # static: mask needed?
            m = ((row + qr >= 0) & (row + qr < hb) &
                 (col + qc >= 0) & (col + qc < wb))
            contrib = jnp.where(m, contrib, 0.0)
        return acc + contrib

    pwa = pwa_ref[...]              # (C_mid, C_in)  bf16
    pwb = pwb_ref[...]              # (C_out, C_mid) bf16
    adda = adda_ref[...]            # (C_mid, 1)     f32
    addb = addb_ref[...]            # (C_out, 1)     f32
    c_in = dwa_ref.shape[0]
    c_mid = dwb_ref.shape[0]
    n_ph = stride * stride

    for b in range(nb):
        # ---- Stage A: ReLU -> depthwise(stride) -> 1x1 (+folded BN) -----------------
        xa = [jnp.maximum(xph_ref[b, ph].astype(jnp.float32), 0.0)
              for ph in range(n_ph)]                                   # (C_in, hwp)
        acc_a = jnp.zeros((c_in, hwp), jnp.float32)
        for i in range(kh):
            for j in range(kw):
                di = i * dilation - padding
                dj = j * dilation - padding
                pr, pc = di % stride, dj % stride
                qr, qc = di // stride, dj // stride
                hb, wb = bounds_a[pr * stride + pc]
                w_col = dwa_ref[:, i * kw + j:i * kw + j + 1]          # (C_in, 1)
                acc_a = tap_acc(acc_a, xa[pr * stride + pc], w_col, qr, qc, hb, wb)
        ya = jnp.dot(pwa, acc_a.astype(jnp.bfloat16),
                     preferred_element_type=jnp.float32) + adda        # (C_mid, hwp)

        # ---- Stage B: ReLU -> depthwise(stride=1, same-size) -> 1x1 (+folded BN) ----
        xb = jnp.maximum(ya, 0.0)
        acc_b = jnp.zeros((c_mid, hwp), jnp.float32)
        for i in range(kh):
            for j in range(kw):
                di = i * dilation - padding
                dj = j * dilation - padding
                w_col = dwb_ref[:, i * kw + j:i * kw + j + 1]          # (C_mid, 1)
                acc_b = tap_acc(acc_b, xb, w_col, di, dj, ho, wo)
        yb = jnp.dot(pwb, acc_b.astype(jnp.bfloat16),
                     preferred_element_type=jnp.float32) + addb        # (C_out, hwp)
        o_ref[b] = yb.astype(o_ref.dtype)


def _fold_sepconv_params(p, eps):
    """Fold BN (running stats) + optional conv bias into the pointwise weights."""
    scale = (p["bn_gamma"].astype(jnp.float32)
             / jnp.sqrt(p["bn_var"].astype(jnp.float32) + eps))            # (C_out,)
    shift = p["bn_beta"].astype(jnp.float32) - p["bn_mean"].astype(jnp.float32) * scale
    dw = p["dw"].astype(jnp.float32).reshape(p["dw"].shape[0], -1)         # (C, k*k)
    pw = (p["pw"].astype(jnp.float32) * scale[:, None]).astype(jnp.bfloat16)  # (Co, Ci)
    add = (p["bias"].astype(jnp.float32) * scale + shift)[:, None]         # (Co, 1)
    return dw, pw, add


def dual_sep_conv(x_nchw, params_a, params_b, *, stride, padding, dilation,
                  eps=1e-5, batch_block=1):
    """DualSepConv forward: op_a (stride=stride) then op_b (stride=1), one fused kernel.

    x_nchw: (N, C_in, H, W). params_*: dict with dw (C,k,k), pw (C_out,C_in), bias,
    bn_gamma, bn_beta, bn_mean, bn_var.
    """
    N, C_in, H, W = x_nchw.shape
    kh = kw = int(params_a["dw"].shape[1])
    C_mid = params_a["pw"].shape[0]
    C_out = params_b["pw"].shape[0]

    if 2 * padding != dilation * (kh - 1):
        # TODO(synk): non-'same' SepConv configs need a different output grid.
        raise NotImplementedError("requires 2*padding == dilation*(kernel_size-1)")
    if N % batch_block != 0:
        raise ValueError("batch_block must divide N")

    nb = batch_block
    n_ph = stride * stride
    ho = -(-H // stride)                      # ceil(H / stride)
    wo = -(-W // stride)
    hw = ho * wo
    hwp = ((hw + 127) // 128) * 128           # lane-dense flat spatial length

    # Polyphase decomposition of the input (a single phase when stride == 1); each
    # phase is flattened to (C, ho*wo) and zero-padded to the lane-dense length hwp.
    phases, bounds = [], []
    for pr in range(stride):
        for pc in range(stride):
            ph = x_nchw[:, :, pr::stride, pc::stride]
            hp, wp = ph.shape[2], ph.shape[3]
            ph = jnp.pad(ph, ((0, 0), (0, 0), (0, ho - hp), (0, wo - wp)))
            ph = ph.reshape(N, C_in, hw)
            ph = jnp.pad(ph, ((0, 0), (0, 0), (0, hwp - hw)))
            phases.append(ph)
            bounds.append((hp, wp))
    xph = jnp.stack(phases, axis=1)           # (N, n_ph, C_in, hwp)
    bounds_a = tuple(bounds)

    # Precomputed flat-grid (row, col) indices used for the per-tap border masks.
    q = jnp.arange(hwp, dtype=jnp.int32)
    rc = jnp.stack([q // wo, q % wo], axis=0)            # (2, hwp) int32

    dwa, pwa, adda = _fold_sepconv_params(params_a, eps)
    dwb, pwb, addb = _fold_sepconv_params(params_b, eps)

    kernel = functools.partial(
        _dual_sep_conv_kernel, nb=nb, stride=stride, padding=padding,
        dilation=dilation, kh=kh, kw=kw, ho=ho, wo=wo, hwp=hwp, bounds_a=bounds_a)

    itemsize = x_nchw.dtype.itemsize
    in_bytes = nb * n_ph * C_in * hwp * itemsize
    out_bytes = nb * C_out * hwp * itemsize
    w_bytes = ((C_in + C_mid) * kh * kw * 4 + (C_mid * C_in + C_out * C_mid) * 2
               + (C_mid + C_out) * 4 + 2 * hwp * 4)
    vmem_bytes = int(min(64 << 20, max(4 << 20,
                                       4 * (2 * (in_bytes + out_bytes) + w_bytes))))

    out_flat = pl.pallas_call(
        kernel,
        out_shape=jax.ShapeDtypeStruct((N, C_out, hwp), x_nchw.dtype),
        grid_spec=pltpu.PrefetchScalarGridSpec(
            num_scalar_prefetch=0,
            grid=(N // nb,),
            in_specs=[
                pl.BlockSpec((nb, n_ph, C_in, hwp), lambda n: (n, 0, 0, 0)),
                # Small constant tables / weights: constant block index -> VMEM resident.
                pl.BlockSpec((2, hwp), lambda n: (0, 0)),
                pl.BlockSpec((C_in, kh * kw), lambda n: (0, 0)),
                pl.BlockSpec((C_mid, C_in), lambda n: (0, 0)),
                pl.BlockSpec((C_mid, 1), lambda n: (0, 0)),
                pl.BlockSpec((C_mid, kh * kw), lambda n: (0, 0)),
                pl.BlockSpec((C_out, C_mid), lambda n: (0, 0)),
                pl.BlockSpec((C_out, 1), lambda n: (0, 0)),
            ],
            out_specs=pl.BlockSpec((nb, C_out, hwp), lambda n: (n, 0, 0)),
        ),
        compiler_params=pltpu.CompilerParams(
            dimension_semantics=("parallel",),
            vmem_limit_bytes=vmem_bytes),
    )(xph, rc, dwa, pwa, adda, dwb, pwb, addb)

    # Drop the lane padding and restore (N, C_out, H_out, W_out); contiguous reshape.
    return out_flat[:, :, :hw].reshape(N, C_out, ho, wo)


def make_sepconv_params(key, c_in, c_out, kernel_size, affine=True):
    """Deterministic synthetic parameters mirroring the torch shapes."""
    k1, k2 = jax.random.split(key)
    # torch depthwise weight: (C_in, 1, k, k) -> stored as (C_in, k, k)
    dw = 0.1 * jax.random.normal(k1, (c_in, kernel_size, kernel_size), jnp.float32)
    # torch pointwise weight: (C_out, C_in, 1, 1) -> stored as (C_out, C_in)
    pw = 0.1 * jax.random.normal(k2, (c_out, c_in), jnp.float32)
    # pointwise bias exists only when affine=False; zeros keep the path uniform.
    bias = jnp.zeros((c_out,), jnp.float32)
    # BatchNorm defaults (affine=True -> gamma=1, beta=0; running stats 0/1).
    bn_gamma = jnp.ones((c_out,), jnp.float32)
    bn_beta = jnp.zeros((c_out,), jnp.float32)
    bn_mean = jnp.zeros((c_out,), jnp.float32)
    bn_var = jnp.ones((c_out,), jnp.float32)
    return dict(dw=dw, pw=pw, bias=bias, bn_gamma=bn_gamma, bn_beta=bn_beta,
                bn_mean=bn_mean, bn_var=bn_var)


def _sepconv_ref(x, p, *, stride, padding, dilation, eps=1e-5):
    """Pure-JAX reference for one SepConv (inference-mode BN)."""
    x = jnp.maximum(x, 0.0)
    dw = p["dw"][:, None, :, :]                        # (C_in, 1, kh, kw), OIHW
    y = jax.lax.conv_general_dilated(
        x, dw, window_strides=(stride, stride),
        padding=[(padding, padding), (padding, padding)],
        rhs_dilation=(dilation, dilation),
        dimension_numbers=("NCHW", "OIHW", "NCHW"),
        feature_group_count=x.shape[1],
        precision=jax.lax.Precision.HIGHEST)
    pw = p["pw"][:, :, None, None]                     # (C_out, C_in, 1, 1)
    y = jax.lax.conv_general_dilated(
        y, pw, window_strides=(1, 1), padding=[(0, 0), (0, 0)],
        dimension_numbers=("NCHW", "OIHW", "NCHW"),
        precision=jax.lax.Precision.HIGHEST)
    y = y + p["bias"][None, :, None, None]
    scale = p["bn_gamma"] / jnp.sqrt(p["bn_var"] + eps)
    shift = p["bn_beta"] - p["bn_mean"] * scale
    return y * scale[None, :, None, None] + shift[None, :, None, None]


if __name__ == "__main__":
    # Small shapes consistent with the module: NCHW input.
    N, C_in, H, W = 2, 4, 16, 16
    C_out = 8
    kernel_size, padding, dilation = 3, 1, 1

    root = jax.random.PRNGKey(0)
    kx, ka, kb = jax.random.split(root, 3)

    x = jax.random.normal(kx, (N, C_in, H, W), jnp.float32)

    # op_a: SepConv(C_in, C_in, k, stride, padding, dilation, affine=True)
    params_a = make_sepconv_params(ka, C_in, C_in, kernel_size)
    # op_b: SepConv(C_in, C_out, k, 1, padding, dilation, affine=True)
    params_b = make_sepconv_params(kb, C_in, C_out, kernel_size)

    def check(stride, batch_block):
        fwd = jax.jit(functools.partial(dual_sep_conv, stride=stride,
                                        padding=padding, dilation=dilation,
                                        batch_block=batch_block))
        out = fwd(x, params_a, params_b)
        jax.block_until_ready(out)
        ref = _sepconv_ref(
            _sepconv_ref(x, params_a, stride=stride, padding=padding,
                         dilation=dilation),
            params_b, stride=1, padding=padding, dilation=dilation)
        assert out.shape == ref.shape, (out.shape, ref.shape)
        assert bool(jnp.all(jnp.isfinite(out)))
        err = float(jnp.max(jnp.abs(out - ref)))
        assert err < 1e-2, f"stride={stride} nb={batch_block}: max abs error {err}"
        return out

    out = check(stride=1, batch_block=1)    # NB201 normal-cell config
    assert out.shape == (N, C_out, H, W), out.shape
    check(stride=1, batch_block=2)          # whole batch folded into one grid step
    check(stride=2, batch_block=1)          # reduction-cell config (polyphase path)

    print("KERNEL_OK")
</pallas_src>

<mosaic_0001>
module attributes {stable_mosaic.version = 11 : i64} {
  func.func @_dual_sep_conv_kernel(%arg0: i32, %arg1: memref<1x1x4x256xf32, #tpu.memory_space<vmem>>, %arg2: memref<2x256xi32, #tpu.memory_space<vmem>>, %arg3: memref<4x9xf32, #tpu.memory_space<vmem>>, %arg4: memref<4x4xbf16, #tpu.memory_space<vmem>>, %arg5: memref<4x1xf32, #tpu.memory_space<vmem>>, %arg6: memref<4x9xf32, #tpu.memory_space<vmem>>, %arg7: memref<8x4xbf16, #tpu.memory_space<vmem>>, %arg8: memref<8x1xf32, #tpu.memory_space<vmem>>, %arg9: memref<1x8x256xf32, #tpu.memory_space<vmem>>) attributes {dimension_semantics = [#tpu.dimension_semantics<parallel>], iteration_bounds = array<i64: 2>, scalar_prefetch = 0 : i64, scratch_operands = 0 : i64, tpu.core_type = #tpu.core_type<tc>, window_params = [{transform_indices = @transform_0, window_bounds = array<i64: 1, 1, 4, 256>}, {pipeline_mode = #tpu.pipeline_mode<synchronous>, transform_indices = @transform_1, window_bounds = array<i64: 2, 256>}, {pipeline_mode = #tpu.pipeline_mode<synchronous>, transform_indices = @transform_2, window_bounds = array<i64: 4, 9>}, {pipeline_mode = #tpu.pipeline_mode<synchronous>, transform_indices = @transform_3, window_bounds = array<i64: 4, 4>}, {pipeline_mode = #tpu.pipeline_mode<synchronous>, transform_indices = @transform_4, window_bounds = array<i64: 4, 1>}, {pipeline_mode = #tpu.pipeline_mode<synchronous>, transform_indices = @transform_5, window_bounds = array<i64: 4, 9>}, {pipeline_mode = #tpu.pipeline_mode<synchronous>, transform_indices = @transform_6, window_bounds = array<i64: 8, 4>}, {pipeline_mode = #tpu.pipeline_mode<synchronous>, transform_indices = @transform_7, window_bounds = array<i64: 8, 1>}, {transform_indices = @transform_8, window_bounds = array<i64: 1, 8, 256>}]} {
    %c0 = arith.constant 0 : index
    %c0_0 = arith.constant 0 : index
    %0 = vector.load %arg2[%c0, %c0_0] : memref<2x256xi32, #tpu.memory_space<vmem>>, vector<1x256xi32>
    %c1 = arith.constant 1 : index
    %c0_1 = arith.constant 0 : index
    %1 = vector.load %arg2[%c1, %c0_1] : memref<2x256xi32, #tpu.memory_space<vmem>>, vector<1x256xi32>
    %c0_2 = arith.constant 0 : index
    %c0_3 = arith.constant 0 : index
    %2 = vector.load %arg4[%c0_2, %c0_3] : memref<4x4xbf16, #tpu.memory_space<vmem>>, vector<4x4xbf16>
    %c0_4 = arith.constant 0 : index
    %c0_5 = arith.constant 0 : index
    %3 = vector.load %arg7[%c0_4, %c0_5] : memref<8x4xbf16, #tpu.memory_space<vmem>>, vector<8x4xbf16>
    %c0_6 = arith.constant 0 : index
    %c0_7 = arith.constant 0 : index
    %4 = vector.load %arg5[%c0_6, %c0_7] : memref<4x1xf32, #tpu.memory_space<vmem>>, vector<4x1xf32>
    %c0_8 = arith.constant 0 : index
    %c0_9 = arith.constant 0 : index
    %5 = vector.load %arg8[%c0_8, %c0_9] : memref<8x1xf32, #tpu.memory_space<vmem>>, vector<8x1xf32>
    %c0_10 = arith.constant 0 : index
    %c0_11 = arith.constant 0 : index
    %c0_12 = arith.constant 0 : index
    %c0_13 = arith.constant 0 : index
    %6 = vector.load %arg1[%c0_10, %c0_11, %c0_12, %c0_13] : memref<1x1x4x256xf32, #tpu.memory_space<vmem>>, vector<1x1x4x256xf32>
    %7 = vector.shape_cast %6 : vector<1x1x4x256xf32> to vector<4x256xf32>
    %cst = arith.constant 0.000000e+00 : f32
    %8 = vector.broadcast %cst : f32 to vector<4x256xf32>
    %9 = arith.maximumf %7, %8 : vector<4x256xf32>
    %cst_14 = arith.constant 0.000000e+00 : f32
    %10 = vector.broadcast %cst_14 : f32 to vector<4x256xf32>
    %c0_15 = arith.constant 0 : index
    %c0_16 = arith.constant 0 : index
    %11 = vector.load %arg3[%c0_15, %c0_16] : memref<4x9xf32, #tpu.memory_space<vmem>>, vector<4x1xf32>
    %c17_i32 = arith.constant 17 : i32
    %12 = tpu.dynamic_rotate %9 by %c17_i32 dim 1 : vector<4x256xf32>, i32 -> vector<4x256xf32>
    %13 = vector.broadcast %11 : vector<4x1xf32> to vector<4x256xf32>
    %14 = arith.mulf %12, %13 : vector<4x256xf32>
    %c-1_i32 = arith.constant -1 : i32
    %15 = vector.broadcast %c-1_i32 : i32 to vector<1x256xi32>
    %16 = arith.addi %0, %15 : vector<1x256xi32>
    %c0_i32 = arith.constant 0 : i32
    %17 = vector.broadcast %c0_i32 : i32 to vector<1x256xi32>
    %18 = arith.cmpi sge, %16, %17 : vector<1x256xi32>
    %c-1_i32_17 = arith.constant -1 : i32
    %19 = vector.broadcast %c-1_i32_17 : i32 to vector<1x256xi32>
    %20 = arith.addi %0, %19 : vector<1x256xi32>
    %c16_i32 = arith.constant 16 : i32
    %21 = vector.broadcast %c16_i32 : i32 to vector<1x256xi32>
    %22 = arith.cmpi slt, %20, %21 : vector<1x256xi32>
    %23 = arith.andi %18, %22 : vector<1x256xi1>
    %c-1_i32_18 = arith.constant -1 : i32
    %24 = vector.broadcast %c-1_i32_18 : i32 to vector<1x256xi32>
    %25 = arith.addi %1, %24 : vector<1x256xi32>
    %c0_i32_19 = arith.constant 0 : i32
    %26 = vector.broadcast %c0_i32_19 : i32 to vector<1x256xi32>
    %27 = arith.cmpi sge, %25, %26 : vector<1x256xi32>
    %28 = arith.andi %23, %27 : vector<1x256xi1>
    %c-1_i32_20 = arith.constant -1 : i32
    %29 = vector.broadcast %c-1_i32_20 : i32 to vector<1x256xi32>
    %30 = arith.addi %1, %29 : vector<1x256xi32>
    %c16_i32_21 = arith.constant 16 : i32
    %31 = vector.broadcast %c16_i32_21 : i32 to vector<1x256xi32>
    %32 = arith.cmpi slt, %30, %31 : vector<1x256xi32>
    %33 = arith.andi %28, %32 : vector<1x256xi1>
    %cst_22 = arith.constant 0.000000e+00 : f32
    %34 = vector.shape_cast %33 : vector<1x256xi1> to vector<1x256xi1>
    %35 = vector.broadcast %34 : vector<1x256xi1> to vector<4x256xi1>
    %36 = vector.broadcast %cst_22 : f32 to vector<4x256xf32>
    %37 = arith.select %35, %14, %36 : vector<4x256xi1>, vector<4x256xf32>
    %38 = arith.addf %10, %37 : vector<4x256xf32>
    %c0_23 = arith.constant 0 : index
    %c1_24 = arith.constant 1 : index
    %39 = vector.load %arg3[%c0_23, %c1_24] : memref<4x9xf32, #tpu.memory_space<vmem>>, vector<4x1xf32>
    %c16_i32_25 = arith.constant 16 : i32
    %40 = tpu.dynamic_rotate %9 by %c16_i32_25 dim 1 : vector<4x256xf32>, i32 -> vector<4x256xf32>
    %41 = vector.broadcast %39 : vector<4x1xf32> to vector<4x256xf32>
    %42 = arith.mulf %40, %41 : vector<4x256xf32>
    %c-1_i32_26 = arith.constant -1 : i32
    %43 = vector.broadcast %c-1_i32_26 : i32 to vector<1x256xi32>
    %44 = arith.addi %0, %43 : vector<1x256xi32>
    %c0_i32_27 = arith.constant 0 : i32
    %45 = vector.broadcast %c0_i32_27 : i32 to vector<1x256xi32>
    %46 = arith.cmpi sge, %44, %45 : vector<1x256xi32>
    %c-1_i32_28 = arith.constant -1 : i32
    %47 = vector.broadcast %c-1_i32_28 : i32 to vector<1x256xi32>
    %48 = arith.addi %0, %47 : vector<1x256xi32>
    %c16_i32_29 = arith.constant 16 : i32
    %49 = vector.broadcast %c16_i32_29 : i32 to vector<1x256xi32>
    %50 = arith.cmpi slt, %48, %49 : vector<1x256xi32>
    %51 = arith.andi %46, %50 : vector<1x256xi1>
    %c0_i32_30 = arith.constant 0 : i32
    %52 = vector.broadcast %c0_i32_30 : i32 to vector<1x256xi32>
    %53 = arith.addi %1, %52 : vector<1x256xi32>
    %c0_i32_31 = arith.constant 0 : i32
    %54 = vector.broadcast %c0_i32_31 : i32 to vector<1x256xi32>
    %55 = arith.cmpi sge, %53, %54 : vector<1x256xi32>
    %56 = arith.andi %51, %55 : vector<1x256xi1>
    %c0_i32_32 = arith.constant 0 : i32
    %57 = vector.broadcast %c0_i32_32 : i32 to vector<1x256xi32>
    %58 = arith.addi %1, %57 : vector<1x256xi32>
    %c16_i32_33 = arith.constant 16 : i32
    %59 = vector.broadcast %c16_i32_33 : i32 to vector<1x256xi32>
    %60 = arith.cmpi slt, %58, %59 : vector<1x256xi32>
    %61 = arith.andi %56, %60 : vector<1x256xi1>
    %cst_34 = arith.constant 0.000000e+00 : f32
    %62 = vector.shape_cast %61 : vector<1x256xi1> to vector<1x256xi1>
    %63 = vector.broadcast %62 : vector<1x256xi1> to vector<4x256xi1>
    %64 = vector.broadcast %cst_34 : f32 to vector<4x256xf32>
    %65 = arith.select %63, %42, %64 : vector<4x256xi1>, vector<4x256xf32>
    %66 = arith.addf %38, %65 : vector<4x256xf32>
    %c0_35 = arith.constant 0 : index
    %c2 = arith.constant 2 : index
    %67 = vector.load %arg3[%c0_35, %c2] : memref<4x9xf32, #tpu.memory_space<vmem>>, vector<4x1xf32>
    %c15_i32 = arith.constant 15 : i32
    %68 = tpu.dynamic_rotate %9 by %c15_i32 dim 1 : vector<4x256xf32>, i32 -> vector<4x256xf32>
    %69 = vector.broadcast %67 : vector<4x1xf32> to vector<4x256xf32>
    %70 = arith.mulf %68, %69 : vector<4x256xf32>
    %c-1_i32_36 = arith.constant -1 : i32
    %71 = vector.broadcast %c-1_i32_36 : i32 to vector<1x256xi32>
    %72 = arith.addi %0, %71 : vector<1x256xi32>
    %c0_i32_37 = arith.constant 0 : i32
    %73 = vector.broadcast %c0_i32_37 : i32 to vector<1x256xi32>
    %74 = arith.cmpi sge, %72, %73 : vector<1x256xi32>
    %c-1_i32_38 = arith.constant -1 : i32
    %75 = vector.broadcast %c-1_i32_38 : i32 to vector<1x256xi32>
    %76 = arith.addi %0, %75 : vector<1x256xi32>
    %c16_i32_39 = arith.constant 16 : i32
    %77 = vector.broadcast %c16_i32_39 : i32 to vector<1x256xi32>
    %78 = arith.cmpi slt, %76, %77 : vector<1x256xi32>
    %79 = arith.andi %74, %78 : vector<1x256xi1>
    %c1_i32 = arith.constant 1 : i32
    %80 = vector.broadcast %c1_i32 : i32 to vector<1x256xi32>
    %81 = arith.addi %1, %80 : vector<1x256xi32>
    %c0_i32_40 = arith.constant 0 : i32
    %82 = vector.broadcast %c0_i32_40 : i32 to vector<1x256xi32>
    %83 = arith.cmpi sge, %81, %82 : vector<1x256xi32>
    %84 = arith.andi %79, %83 : vector<1x256xi1>
    %c1_i32_41 = arith.constant 1 : i32
    %85 = vector.broadcast %c1_i32_41 : i32 to vector<1x256xi32>
    %86 = arith.addi %1, %85 : vector<1x256xi32>
    %c16_i32_42 = arith.constant 16 : i32
    %87 = vector.broadcast %c16_i32_42 : i32 to vector<1x256xi32>
    %88 = arith.cmpi slt, %86, %87 : vector<1x256xi32>
    %89 = arith.andi %84, %88 : vector<1x256xi1>
    %cst_43 = arith.constant 0.000000e+00 : f32
    %90 = vector.shape_cast %89 : vector<1x256xi1> to vector<1x256xi1>
    %91 = vector.broadcast %90 : vector<1x256xi1> to vector<4x256xi1>
    %92 = vector.broadcast %cst_43 : f32 to vector<4x256xf32>
    %93 = arith.select %91, %70, %92 : vector<4x256xi1>, vector<4x256xf32>
    %94 = arith.addf %66, %93 : vector<4x256xf32>
    %c0_44 = arith.constant 0 : index
    %c3 = arith.constant 3 : index
    %95 = vector.load %arg3[%c0_44, %c3] : memref<4x9xf32, #tpu.memory_space<vmem>>, vector<4x1xf32>
    %c1_i32_45 = arith.constant 1 : i32
    %96 = tpu.dynamic_rotate %9 by %c1_i32_45 dim 1 : vector<4x256xf32>, i32 -> vector<4x256xf32>
    %97 = vector.broadcast %95 : vector<4x1xf32> to vector<4x256xf32>
    %98 = arith.mulf %96, %97 : vector<4x256xf32>
    %c0_i32_46 = arith.constant 0 : i32
    %99 = vector.broadcast %c0_i32_46 : i32 to vector<1x256xi32>
    %100 = arith.addi %0, %99 : vector<1x256xi32>
    %c0_i32_47 = arith.constant 0 : i32
    %101 = vector.broadcast %c0_i32_47 : i32 to vector<1x256xi32>
    %102 = arith.cmpi sge, %100, %101 : vector<1x256xi32>
    %c0_i32_48 = arith.constant 0 : i32
    %103 = vector.broadcast %c0_i32_48 : i32 to vector<1x256xi32>
    %104 = arith.addi %0, %103 : vector<1x256xi32>
    %c16_i32_49 = arith.constant 16 : i32
    %105 = vector.broadcast %c16_i32_49 : i32 to vector<1x256xi32>
    %106 = arith.cmpi slt, %104, %105 : vector<1x256xi32>
    %107 = arith.andi %102, %106 : vector<1x256xi1>
    %c-1_i32_50 = arith.constant -1 : i32
    %108 = vector.broadcast %c-1_i32_50 : i32 to vector<1x256xi32>
    %109 = arith.addi %1, %108 : vector<1x256xi32>
    %c0_i32_51 = arith.constant 0 : i32
    %110 = vector.broadcast %c0_i32_51 : i32 to vector<1x256xi32>
    %111 = arith.cmpi sge, %109, %110 : vector<1x256xi32>
    %112 = arith.andi %107, %111 : vector<1x256xi1>
    %c-1_i32_52 = arith.constant -1 : i32
    %113 = vector.broadcast %c-1_i32_52 : i32 to vector<1x256xi32>
    %114 = arith.addi %1, %113 : vector<1x256xi32>
    %c16_i32_53 = arith.constant 16 : i32
    %115 = vector.broadcast %c16_i32_53 : i32 to vector<1x256xi32>
    %116 = arith.cmpi slt, %114, %115 : vector<1x256xi32>
    %117 = arith.andi %112, %116 : vector<1x256xi1>
    %cst_54 = arith.constant 0.000000e+00 : f32
    %118 = vector.shape_cast %117 : vector<1x256xi1> to vector<1x256xi1>
    %119 = vector.broadcast %118 : vector<1x256xi1> to vector<4x256xi1>
    %120 = vector.broadcast %cst_54 : f32 to vector<4x256xf32>
    %121 = arith.select %119, %98, %120 : vector<4x256xi1>, vector<4x256xf32>
    %122 = arith.addf %94, %121 : vector<4x256xf32>
    %c0_55 = arith.constant 0 : index
    %c4 = arith.constant 4 : index
    %123 = vector.load %arg3[%c0_55, %c4] : memref<4x9xf32, #tpu.memory_space<vmem>>, vector<4x1xf32>
    %124 = vector.broadcast %123 : vector<4x1xf32> to vector<4x256xf32>
    %125 = arith.mulf %9, %124 : vector<4x256xf32>
    %126 = arith.addf %122, %125 : vector<4x256xf32>
    %c0_56 = arith.constant 0 : index
    %c5 = arith.constant 5 : index
    %127 = vector.load %arg3[%c0_56, %c5] : memref<4x9xf32, #tpu.memory_space<vmem>>, vector<4x1xf32>
    %c255_i32 = arith.constant 255 : i32
    %128 = tpu.dynamic_rotate %9 by %c255_i32 dim 1 : vector<4x256xf32>, i32 -> vector<4x256xf32>
    %129 = vector.broadcast %127 : vector<4x1xf32> to vector<4x256xf32>
    %130 = arith.mulf %128, %129 : vector<4x256xf32>
    %c0_i32_57 = arith.constant 0 : i32
    %131 = vector.broadcast %c0_i32_57 : i32 to vector<1x256xi32>
    %132 = arith.addi %0, %131 : vector<1x256xi32>
    %c0_i32_58 = arith.constant 0 : i32
    %133 = vector.broadcast %c0_i32_58 : i32 to vector<1x256xi32>
    %134 = arith.cmpi sge, %132, %133 : vector<1x256xi32>
    %c0_i32_59 = arith.constant 0 : i32
    %135 = vector.broadcast %c0_i32_59 : i32 to vector<1x256xi32>
    %136 = arith.addi %0, %135 : vector<1x256xi32>
    %c16_i32_60 = arith.constant 16 : i32
    %137 = vector.broadcast %c16_i32_60 : i32 to vector<1x256xi32>
    %138 = arith.cmpi slt, %136, %137 : vector<1x256xi32>
    %139 = arith.andi %134, %138 : vector<1x256xi1>
    %c1_i32_61 = arith.constant 1 : i32
    %140 = vector.broadcast %c1_i32_61 : i32 to vector<1x256xi32>
    %141 = arith.addi %1, %140 : vector<1x256xi32>
    %c0_i32_62 = arith.constant 0 : i32
    %142 = vector.broadcast %c0_i32_62 : i32 to vector<1x256xi32>
    %143 = arith.cmpi sge, %141, %142 : vector<1x256xi32>
    %144 = arith.andi %139, %143 : vector<1x256xi1>
    %c1_i32_63 = arith.constant 1 : i32
    %145 = vector.broadcast %c1_i32_63 : i32 to vector<1x256xi32>
    %146 = arith.addi %1, %145 : vector<1x256xi32>
    %c16_i32_64 = arith.constant 16 : i32
    %147 = vector.broadcast %c16_i32_64 : i32 to vector<1x256xi32>
    %148 = arith.cmpi slt, %146, %147 : vector<1x256xi32>
    %149 = arith.andi %144, %148 : vector<1x256xi1>
    %cst_65 = arith.constant 0.000000e+00 : f32
    %150 = vector.shape_cast %149 : vector<1x256xi1> to vector<1x256xi1>
    %151 = vector.broadcast %150 : vector<1x256xi1> to vector<4x256xi1>
    %152 = vector.broadcast %cst_65 : f32 to vector<4x256xf32>
    %153 = arith.select %151, %130, %152 : vector<4x256xi1>, vector<4x256xf32>
    %154 = arith.addf %126, %153 : vector<4x256xf32>
    %c0_66 = arith.constant 0 : index
    %c6 = arith.constant 6 : index
    %155 = vector.load %arg3[%c0_66, %c6] : memref<4x9xf32, #tpu.memory_space<vmem>>, vector<4x1xf32>
    %c241_i32 = arith.constant 241 : i32
    %156 = tpu.dynamic_rotate %9 by %c241_i32 dim 1 : vector<4x256xf32>, i32 -> vector<4x256xf32>
    %157 = vector.broadcast %155 : vector<4x1xf32> to vector<4x256xf32>
    %158 = arith.mulf %156, %157 : vector<4x256xf32>
    %c1_i32_67 = arith.constant 1 : i32
    %159 = vector.broadcast %c1_i32_67 : i32 to vector<1x256xi32>
    %160 = arith.addi %0, %159 : vector<1x256xi32>
    %c0_i32_68 = arith.constant 0 : i32
    %161 = vector.broadcast %c0_i32_68 : i32 to vector<1x256xi32>
    %162 = arith.cmpi sge, %160, %161 : vector<1x256xi32>
    %c1_i32_69 = arith.constant 1 : i32
    %163 = vector.broadcast %c1_i32_69 : i32 to vector<1x256xi32>
    %164 = arith.addi %0, %163 : vector<1x256xi32>
    %c16_i32_70 = arith.constant 16 : i32
    %165 = vector.broadcast %c16_i32_70 : i32 to vector<1x256xi32>
    %166 = arith.cmpi slt, %164, %165 : vector<1x256xi32>
    %167 = arith.andi %162, %166 : vector<1x256xi1>
    %c-1_i32_71 = arith.constant -1 : i32
    %168 = vector.broadcast %c-1_i32_71 : i32 to vector<1x256xi32>
    %169 = arith.addi %1, %168 : vector<1x256xi32>
    %c0_i32_72 = arith.constant 0 : i32
    %170 = vector.broadcast %c0_i32_72 : i32 to vector<1x256xi32>
    %171 = arith.cmpi sge, %169, %170 : vector<1x256xi32>
    %172 = arith.andi %167, %171 : vector<1x256xi1>
    %c-1_i32_73 = arith.constant -1 : i32
    %173 = vector.broadcast %c-1_i32_73 : i32 to vector<1x256xi32>
    %174 = arith.addi %1, %173 : vector<1x256xi32>
    %c16_i32_74 = arith.constant 16 : i32
    %175 = vector.broadcast %c16_i32_74 : i32 to vector<1x256xi32>
    %176 = arith.cmpi slt, %174, %175 : vector<1x256xi32>
    %177 = arith.andi %172, %176 : vector<1x256xi1>
    %cst_75 = arith.constant 0.000000e+00 : f32
    %178 = vector.shape_cast %177 : vector<1x256xi1> to vector<1x256xi1>
    %179 = vector.broadcast %178 : vector<1x256xi1> to vector<4x256xi1>
    %180 = vector.broadcast %cst_75 : f32 to vector<4x256xf32>
    %181 = arith.select %179, %158, %180 : vector<4x256xi1>, vector<4x256xf32>
    %182 = arith.addf %154, %181 : vector<4x256xf32>
    %c0_76 = arith.constant 0 : index
    %c7 = arith.constant 7 : index
    %183 = vector.load %arg3[%c0_76, %c7] : memref<4x9xf32, #tpu.memory_space<vmem>>, vector<4x1xf32>
    %c240_i32 = arith.constant 240 : i32
    %184 = tpu.dynamic_rotate %9 by %c240_i32 dim 1 : vector<4x256xf32>, i32 -> vector<4x256xf32>
    %185 = vector.broadcast %183 : vector<4x1xf32> to vector<4x256xf32>
    %186 = arith.mulf %184, %185 : vector<4x256xf32>
    %c1_i32_77 = arith.constant 1 : i32
    %187 = vector.broadcast %c1_i32_77 : i32 to vector<1x256xi32>
    %188 = arith.addi %0, %187 : vector<1x256xi32>
    %c0_i32_78 = arith.constant 0 : i32
    %189 = vector.broadcast %c0_i32_78 : i32 to vector<1x256xi32>
    %190 = arith.cmpi sge, %188, %189 : vector<1x256xi32>
    %c1_i32_79 = arith.constant 1 : i32
    %191 = vector.broadcast %c1_i32_79 : i32 to vector<1x256xi32>
    %192 = arith.addi %0, %191 : vector<1x256xi32>
    %c16_i32_80 = arith.constant 16 : i32
    %193 = vector.broadcast %c16_i32_80 : i32 to vector<1x256xi32>
    %194 = arith.cmpi slt, %192, %193 : vector<1x256xi32>
    %195 = arith.andi %190, %194 : vector<1x256xi1>
    %c0_i32_81 = arith.constant 0 : i32
    %196 = vector.broadcast %c0_i32_81 : i32 to vector<1x256xi32>
    %197 = arith.addi %1, %196 : vector<1x256xi32>
    %c0_i32_82 = arith.constant 0 : i32
    %198 = vector.broadcast %c0_i32_82 : i32 to vector<1x256xi32>
    %199 = arith.cmpi sge, %197, %198 : vector<1x256xi32>
    %200 = arith.andi %195, %199 : vector<1x256xi1>
    %c0_i32_83 = arith.constant 0 : i32
    %201 = vector.broadcast %c0_i32_83 : i32 to vector<1x256xi32>
    %202 = arith.addi %1, %201 : vector<1x256xi32>
    %c16_i32_84 = arith.constant 16 : i32
    %203 = vector.broadcast %c16_i32_84 : i32 to vector<1x256xi32>
    %204 = arith.cmpi slt, %202, %203 : vector<1x256xi32>
    %205 = arith.andi %200, %204 : vector<1x256xi1>
    %cst_85 = arith.constant 0.000000e+00 : f32
    %206 = vector.shape_cast %205 : vector<1x256xi1> to vector<1x256xi1>
    %207 = vector.broadcast %206 : vector<1x256xi1> to vector<4x256xi1>
    %208 = vector.broadcast %cst_85 : f32 to vector<4x256xf32>
    %209 = arith.select %207, %186, %208 : vector<4x256xi1>, vector<4x256xf32>
    %210 = arith.addf %182, %209 : vector<4x256xf32>
    %c0_86 = arith.constant 0 : index
    %c8 = arith.constant 8 : index
    %211 = vector.load %arg3[%c0_86, %c8] : memref<4x9xf32, #tpu.memory_space<vmem>>, vector<4x1xf32>
    %c239_i32 = arith.constant 239 : i32
    %212 = tpu.dynamic_rotate %9 by %c239_i32 dim 1 : vector<4x256xf32>, i32 -> vector<4x256xf32>
    %213 = vector.broadcast %211 : vector<4x1xf32> to vector<4x256xf32>
    %214 = arith.mulf %212, %213 : vector<4x256xf32>
    %c1_i32_87 = arith.constant 1 : i32
    %215 = vector.broadcast %c1_i32_87 : i32 to vector<1x256xi32>
    %216 = arith.addi %0, %215 : vector<1x256xi32>
    %c0_i32_88 = arith.constant 0 : i32
    %217 = vector.broadcast %c0_i32_88 : i32 to vector<1x256xi32>
    %218 = arith.cmpi sge, %216, %217 : vector<1x256xi32>
    %c1_i32_89 = arith.constant 1 : i32
    %219 = vector.broadcast %c1_i32_89 : i32 to vector<1x256xi32>
    %220 = arith.addi %0, %219 : vector<1x256xi32>
    %c16_i32_90 = arith.constant 16 : i32
    %221 = vector.broadcast %c16_i32_90 : i32 to vector<1x256xi32>
    %222 = arith.cmpi slt, %220, %221 : vector<1x256xi32>
    %223 = arith.andi %218, %222 : vector<1x256xi1>
    %c1_i32_91 = arith.constant 1 : i32
    %224 = vector.broadcast %c1_i32_91 : i32 to vector<1x256xi32>
    %225 = arith.addi %1, %224 : vector<1x256xi32>
    %c0_i32_92 = arith.constant 0 : i32
    %226 = vector.broadcast %c0_i32_92 : i32 to vector<1x256xi32>
    %227 = arith.cmpi sge, %225, %226 : vector<1x256xi32>
    %228 = arith.andi %223, %227 : vector<1x256xi1>
    %c1_i32_93 = arith.constant 1 : i32
    %229 = vector.broadcast %c1_i32_93 : i32 to vector<1x256xi32>
    %230 = arith.addi %1, %229 : vector<1x256xi32>
    %c16_i32_94 = arith.constant 16 : i32
    %231 = vector.broadcast %c16_i32_94 : i32 to vector<1x256xi32>
    %232 = arith.cmpi slt, %230, %231 : vector<1x256xi32>
    %233 = arith.andi %228, %232 : vector<1x256xi1>
    %cst_95 = arith.constant 0.000000e+00 : f32
    %234 = vector.shape_cast %233 : vector<1x256xi1> to vector<1x256xi1>
    %235 = vector.broadcast %234 : vector<1x256xi1> to vector<4x256xi1>
    %236 = vector.broadcast %cst_95 : f32 to vector<4x256xf32>
    %237 = arith.select %235, %214, %236 : vector<4x256xi1>, vector<4x256xf32>
    %238 = arith.addf %210, %237 : vector<4x256xf32>
    %239 = arith.truncf %238 : vector<4x256xf32> to vector<4x256xbf16>
    %cst_96 = arith.constant dense<0.000000e+00> : vector<4x256xf32>
    %240 = tpu.matmul %2, %239, %cst_96 {dimension_numbers = #tpu.dot_dimension_numbers<[1], [0], [0], [1], [0, 0, 1, 1], [], []>} : vector<4x4xbf16>, vector<4x256xbf16>, vector<4x256xf32> -> vector<4x256xf32>
    %241 = vector.broadcast %4 : vector<4x1xf32> to vector<4x256xf32>
    %242 = arith.addf %240, %241 : vector<4x256xf32>
    %cst_97 = arith.constant 0.000000e+00 : f32
    %243 = vector.broadcast %cst_97 : f32 to vector<4x256xf32>
    %244 = arith.maximumf %242, %243 : vector<4x256xf32>
    %cst_98 = arith.constant 0.000000e+00 : f32
    %245 = vector.broadcast %cst_98 : f32 to vector<4x256xf32>
    %c0_99 = arith.constant 0 : index
    %c0_100 = arith.constant 0 : index
    %246 = vector.load %arg6[%c0_99, %c0_100] : memref<4x9xf32, #tpu.memory_space<vmem>>, vector<4x1xf32>
    %c17_i32_101 = arith.constant 17 : i32
    %247 = tpu.dynamic_rotate %244 by %c17_i32_101 dim 1 : vector<4x256xf32>, i32 -> vector<4x256xf32>
    %248 = vector.broadcast %246 : vector<4x1xf32> to vector<4x256xf32>
    %249 = arith.mulf %247, %248 : vector<4x256xf32>
    %c-1_i32_102 = arith.constant -1 : i32
    %250 = vector.broadcast %c-1_i32_102 : i32 to vector<1x256xi32>
    %251 = arith.addi %0, %250 : vector<1x256xi32>
    %c0_i32_103 = arith.constant 0 : i32
    %252 = vector.broadcast %c0_i32_103 : i32 to vector<1x256xi32>
    %253 = arith.cmpi sge, %251, %252 : vector<1x256xi32>
    %c-1_i32_104 = arith.constant -1 : i32
    %254 = vector.broadcast %c-1_i32_104 : i32 to vector<1x256xi32>
    %255 = arith.addi %0, %254 : vector<1x256xi32>
    %c16_i32_105 = arith.constant 16 : i32
    %256 = vector.broadcast %c16_i32_105 : i32 to vector<1x256xi32>
    %257 = arith.cmpi slt, %255, %256 : vector<1x256xi32>
    %258 = arith.andi %253, %257 : vector<1x256xi1>
    %c-1_i32_106 = arith.constant -1 : i32
    %259 = vector.broadcast %c-1_i32_106 : i32 to vector<1x256xi32>
    %260 = arith.addi %1, %259 : vector<1x256xi32>
    %c0_i32_107 = arith.constant 0 : i32
    %261 = vector.broadcast %c0_i32_107 : i32 to vector<1x256xi32>
    %262 = arith.cmpi sge, %260, %261 : vector<1x256xi32>
    %263 = arith.andi %258, %262 : vector<1x256xi1>
    %c-1_i32_108 = arith.constant -1 : i32
    %264 = vector.broadcast %c-1_i32_108 : i32 to vector<1x256xi32>
    %265 = arith.addi %1, %264 : vector<1x256xi32>
    %c16_i32_109 = arith.constant 16 : i32
    %266 = vector.broadcast %c16_i32_109 : i32 to vector<1x256xi32>
    %267 = arith.cmpi slt, %265, %266 : vector<1x256xi32>
    %268 = arith.andi %263, %267 : vector<1x256xi1>
    %cst_110 = arith.constant 0.000000e+00 : f32
    %269 = vector.shape_cast %268 : vector<1x256xi1> to vector<1x256xi1>
    %270 = vector.broadcast %269 : vector<1x256xi1> to vector<4x256xi1>
    %271 = vector.broadcast %cst_110 : f32 to vector<4x256xf32>
    %272 = arith.select %270, %249, %271 : vector<4x256xi1>, vector<4x256xf32>
    %273 = arith.addf %245, %272 : vector<4x256xf32>
    %c0_111 = arith.constant 0 : index
    %c1_112 = arith.constant 1 : index
    %274 = vector.load %arg6[%c0_111, %c1_112] : memref<4x9xf32, #tpu.memory_space<vmem>>, vector<4x1xf32>
    %c16_i32_113 = arith.constant 16 : i32
    %275 = tpu.dynamic_rotate %244 by %c16_i32_113 dim 1 : vector<4x256xf32>, i32 -> vector<4x256xf32>
    %276 = vector.broadcast %274 : vector<4x1xf32> to vector<4x256xf32>
    %277 = arith.mulf %275, %276 : vector<4x256xf32>
    %c-1_i32_114 = arith.constant -1 : i32
    %278 = vector.broadcast %c-1_i32_114 : i32 to vector<1x256xi32>
    %279 = arith.addi %0, %278 : vector<1x256xi32>
    %c0_i32_115 = arith.constant 0 : i32
    %280 = vector.broadcast %c0_i32_115 : i32 to vector<1x256xi32>
    %281 = arith.cmpi sge, %279, %280 : vector<1x256xi32>
    %c-1_i32_116 = arith.constant -1 : i32
    %282 = vector.broadcast %c-1_i32_116 : i32 to vector<1x256xi32>
    %283 = arith.addi %0, %282 : vector<1x256xi32>
    %c16_i32_117 = arith.constant 16 : i32
    %284 = vector.broadcast %c16_i32_117 : i32 to vector<1x256xi32>
    %285 = arith.cmpi slt, %283, %284 : vector<1x256xi32>
    %286 = arith.andi %281, %285 : vector<1x256xi1>
    %c0_i32_118 = arith.constant 0 : i32
    %287 = vector.broadcast %c0_i32_118 : i32 to vector<1x256xi32>
    %288 = arith.addi %1, %287 : vector<1x256xi32>
    %c0_i32_119 = arith.constant 0 : i32
    %289 = vector.broadcast %c0_i32_119 : i32 to vector<1x256xi32>
    %290 = arith.cmpi sge, %288, %289 : vector<1x256xi32>
    %291 = arith.andi %286, %290 : vector<1x256xi1>
    %c0_i32_120 = arith.constant 0 : i32
    %292 = vector.broadcast %c0_i32_120 : i32 to vector<1x256xi32>
    %293 = arith.addi %1, %292 : vector<1x256xi32>
    %c16_i32_121 = arith.constant 16 : i32
    %294 = vector.broadcast %c16_i32_121 : i32 to vector<1x256xi32>
    %295 = arith.cmpi slt, %293, %294 : vector<1x256xi32>
    %296 = arith.andi %291, %295 : vector<1x256xi1>
    %cst_122 = arith.constant 0.000000e+00 : f32
    %297 = vector.shape_cast %296 : vector<1x256xi1> to vector<1x256xi1>
    %298 = vector.broadcast %297 : vector<1x256xi1> to vector<4x256xi1>
    %299 = vector.broadcast %cst_122 : f32 to vector<4x256xf32>
    %300 = arith.select %298, %277, %299 : vector<4x256xi1>, vector<4x256xf32>
    %301 = arith.addf %273, %300 : vector<4x256xf32>
    %c0_123 = arith.constant 0 : index
    %c2_124 = arith.constant 2 : index
    %302 = vector.load %arg6[%c0_123, %c2_124] : memref<4x9xf32, #tpu.memory_space<vmem>>, vector<4x1xf32>
    %c15_i32_125 = arith.constant 15 : i32
    %303 = tpu.dynamic_rotate %244 by %c15_i32_125 dim 1 : vector<4x256xf32>, i32 -> vector<4x256xf32>
    %304 = vector.broadcast %302 : vector<4x1xf32> to vector<4x256xf32>
    %305 = arith.mulf %303, %304 : vector<4x256xf32>
    %c-1_i32_126 = arith.constant -1 : i32
    %306 = vector.broadcast %c-1_i32_126 : i32 to vector<1x256xi32>
    %307 = arith.addi %0, %306 : vector<1x256xi32>
    %c0_i32_127 = arith.constant 0 : i32
    %308 = vector.broadcast %c0_i32_127 : i32 to vector<1x256xi32>
    %309 = arith.cmpi sge, %307, %308 : vector<1x256xi32>
    %c-1_i32_128 = arith.constant -1 : i32
    %310 = vector.broadcast %c-1_i32_128 : i32 to vector<1x256xi32>
    %311 = arith.addi %0, %310 : vector<1x256xi32>
    %c16_i32_129 = arith.constant 16 : i32
    %312 = vector.broadcast %c16_i32_129 : i32 to vector<1x256xi32>
    %313 = arith.cmpi slt, %311, %312 : vector<1x256xi32>
    %314 = arith.andi %309, %313 : vector<1x256xi1>
    %c1_i32_130 = arith.constant 1 : i32
    %315 = vector.broadcast %c1_i32_130 : i32 to vector<1x256xi32>
    %316 = arith.addi %1, %315 : vector<1x256xi32>
    %c0_i32_131 = arith.constant 0 : i32
    %317 = vector.broadcast %c0_i32_131 : i32 to vector<1x256xi32>
    %318 = arith.cmpi sge, %316, %317 : vector<1x256xi32>
    %319 = arith.andi %314, %318 : vector<1x256xi1>
    %c1_i32_132 = arith.constant 1 : i32
    %320 = vector.broadcast %c1_i32_132 : i32 to vector<1x256xi32>
    %321 = arith.addi %1, %320 : vector<1x256xi32>
    %c16_i32_133 = arith.constant 16 : i32
    %322 = vector.broadcast %c16_i32_133 : i32 to vector<1x256xi32>
    %323 = arith.cmpi slt, %321, %322 : vector<1x256xi32>
    %324 = arith.andi %319, %323 : vector<1x256xi1>
    %cst_134 = arith.constant 0.000000e+00 : f32
    %325 = vector.shape_cast %324 : vector<1x256xi1> to vector<1x256xi1>
    %326 = vector.broadcast %325 : vector<1x256xi1> to vector<4x256xi1>
    %327 = vector.broadcast %cst_134 : f32 to vector<4x256xf32>
    %328 = arith.select %326, %305, %327 : vector<4x256xi1>, vector<4x256xf32>
    %329 = arith.addf %301, %328 : vector<4x256xf32>
    %c0_135 = arith.constant 0 : index
    %c3_136 = arith.constant 3 : index
    %330 = vector.load %arg6[%c0_135, %c3_136] : memref<4x9xf32, #tpu.memory_space<vmem>>, vector<4x1xf32>
    %c1_i32_137 = arith.constant 1 : i32
    %331 = tpu.dynamic_rotate %244 by %c1_i32_137 dim 1 : vector<4x256xf32>, i32 -> vector<4x256xf32>
    %332 = vector.broadcast %330 : vector<4x1xf32> to vector<4x256xf32>
    %333 = arith.mulf %331, %332 : vector<4x256xf32>
    %c0_i32_138 = arith.constant 0 : i32
    %334 = vector.broadcast %c0_i32_138 : i32 to vector<1x256xi32>
    %335 = arith.addi %0, %334 : vector<1x256xi32>
    %c0_i32_139 = arith.constant 0 : i32
    %336 = vector.broadcast %c0_i32_139 : i32 to vector<1x256xi32>
    %337 = arith.cmpi sge, %335, %336 : vector<1x256xi32>
    %c0_i32_140 = arith.constant 0 : i32
    %338 = vector.broadcast %c0_i32_140 : i32 to vector<1x256xi32>
    %339 = arith.addi %0, %338 : vector<1x256xi32>
    %c16_i32_141 = arith.constant 16 : i32
    %340 = vector.broadcast %c16_i32_141 : i32 to vector<1x256xi32>
    %341 = arith.cmpi slt, %339, %340 : vector<1x256xi32>
    %342 = arith.andi %337, %341 : vector<1x256xi1>
    %c-1_i32_142 = arith.constant -1 : i32
    %343 = vector.broadcast %c-1_i32_142 : i32 to vector<1x256xi32>
    %344 = arith.addi %1, %343 : vector<1x256xi32>
    %c0_i32_143 = arith.constant 0 : i32
    %345 = vector.broadcast %c0_i32_143 : i32 to vector<1x256xi32>
    %346 = arith.cmpi sge, %344, %345 : vector<1x256xi32>
    %347 = arith.andi %342, %346 : vector<1x256xi1>
    %c-1_i32_144 = arith.constant -1 : i32
    %348 = vector.broadcast %c-1_i32_144 : i32 to vector<1x256xi32>
    %349 = arith.addi %1, %348 : vector<1x256xi32>
    %c16_i32_145 = arith.constant 16 : i32
    %350 = vector.broadcast %c16_i32_145 : i32 to vector<1x256xi32>
    %351 = arith.cmpi slt, %349, %350 : vector<1x256xi32>
    %352 = arith.andi %347, %351 : vector<1x256xi1>
    %cst_146 = arith.constant 0.000000e+00 : f32
    %353 = vector.shape_cast %352 : vector<1x256xi1> to vector<1x256xi1>
    %354 = vector.broadcast %353 : vector<1x256xi1> to vector<4x256xi1>
    %355 = vector.broadcast %cst_146 : f32 to vector<4x256xf32>
    %356 = arith.select %354, %333, %355 : vector<4x256xi1>, vector<4x256xf32>
    %357 = arith.addf %329, %356 : vector<4x256xf32>
    %c0_147 = arith.constant 0 : index
    %c4_148 = arith.constant 4 : index
    %358 = vector.load %arg6[%c0_147, %c4_148] : memref<4x9xf32, #tpu.memory_space<vmem>>, vector<4x1xf32>
    %359 = vector.broadcast %358 : vector<4x1xf32> to vector<4x256xf32>
    %360 = arith.mulf %244, %359 : vector<4x256xf32>
    %361 = arith.addf %357, %360 : vector<4x256xf32>
    %c0_149 = arith.constant 0 : index
    %c5_150 = arith.constant 5 : index
    %362 = vector.load %arg6[%c0_149, %c5_150] : memref<4x9xf32, #tpu.memory_space<vmem>>, vector<4x1xf32>
    %c255_i32_151 = arith.constant 255 : i32
    %363 = tpu.dynamic_rotate %244 by %c255_i32_151 dim 1 : vector<4x256xf32>, i32 -> vector<4x256xf32>
    %364 = vector.broadcast %362 : vector<4x1xf32> to vector<4x256xf32>
    %365 = arith.mulf %363, %364 : vector<4x256xf32>
    %c0_i32_152 = arith.constant 0 : i32
    %366 = vector.broadcast %c0_i32_152 : i32 to vector<1x256xi32>
    %367 = arith.addi %0, %366 : vector<1x256xi32>
    %c0_i32_153 = arith.constant 0 : i32
    %368 = vector.broadcast %c0_i32_153 : i32 to vector<1x256xi32>
    %369 = arith.cmpi sge, %367, %368 : vector<1x256xi32>
    %c0_i32_154 = arith.constant 0 : i32
    %370 = vector.broadcast %c0_i32_154 : i32 to vector<1x256xi32>
    %371 = arith.addi %0, %370 : vector<1x256xi32>
    %c16_i32_155 = arith.constant 16 : i32
    %372 = vector.broadcast %c16_i32_155 : i32 to vector<1x256xi32>
    %373 = arith.cmpi slt, %371, %372 : vector<1x256xi32>
    %374 = arith.andi %369, %373 : vector<1x256xi1>
    %c1_i32_156 = arith.constant 1 : i32
    %375 = vector.broadcast %c1_i32_156 : i32 to vector<1x256xi32>
    %376 = arith.addi %1, %375 : vector<1x256xi32>
    %c0_i32_157 = arith.constant 0 : i32
    %377 = vector.broadcast %c0_i32_157 : i32 to vector<1x256xi32>
    %378 = arith.cmpi sge, %376, %377 : vector<1x256xi32>
    %379 = arith.andi %374, %378 : vector<1x256xi1>
    %c1_i32_158 = arith.constant 1 : i32
    %380 = vector.broadcast %c1_i32_158 : i32 to vector<1x256xi32>
    %381 = arith.addi %1, %380 : vector<1x256xi32>
    %c16_i32_159 = arith.constant 16 : i32
    %382 = vector.broadcast %c16_i32_159 : i32 to vector<1x256xi32>
    %383 = arith.cmpi slt, %381, %382 : vector<1x256xi32>
    %384 = arith.andi %379, %383 : vector<1x256xi1>
    %cst_160 = arith.constant 0.000000e+00 : f32
    %385 = vector.shape_cast %384 : vector<1x256xi1> to vector<1x256xi1>
    %386 = vector.broadcast %385 : vector<1x256xi1> to vector<4x256xi1>
    %387 = vector.broadcast %cst_160 : f32 to vector<4x256xf32>
    %388 = arith.select %386, %365, %387 : vector<4x256xi1>, vector<4x256xf32>
    %389 = arith.addf %361, %388 : vector<4x256xf32>
    %c0_161 = arith.constant 0 : index
    %c6_162 = arith.constant 6 : index
    %390 = vector.load %arg6[%c0_161, %c6_162] : memref<4x9xf32, #tpu.memory_space<vmem>>, vector<4x1xf32>
    %c241_i32_163 = arith.constant 241 : i32
    %391 = tpu.dynamic_rotate %244 by %c241_i32_163 dim 1 : vector<4x256xf32>, i32 -> vector<4x256xf32>
    %392 = vector.broadcast %390 : vector<4x1xf32> to vector<4x256xf32>
    %393 = arith.mulf %391, %392 : vector<4x256xf32>
    %c1_i32_164 = arith.constant 1 : i32
    %394 = vector.broadcast %c1_i32_164 : i32 to vector<1x256xi32>
    %395 = arith.addi %0, %394 : vector<1x256xi32>
    %c0_i32_165 = arith.constant 0 : i32
    %396 = vector.broadcast %c0_i32_165 : i32 to vector<1x256xi32>
    %397 = arith.cmpi sge, %395, %396 : vector<1x256xi32>
    %c1_i32_166 = arith.constant 1 : i32
    %398 = vector.broadcast %c1_i32_166 : i32 to vector<1x256xi32>
    %399 = arith.addi %0, %398 : vector<1x256xi32>
    %c16_i32_167 = arith.constant 16 : i32
    %400 = vector.broadcast %c16_i32_167 : i32 to vector<1x256xi32>
    %401 = arith.cmpi slt, %399, %400 : vector<1x256xi32>
    %402 = arith.andi %397, %401 : vector<1x256xi1>
    %c-1_i32_168 = arith.constant -1 : i32
    %403 = vector.broadcast %c-1_i32_168 : i32 to vector<1x256xi32>
    %404 = arith.addi %1, %403 : vector<1x256xi32>
    %c0_i32_169 = arith.constant 0 : i32
    %405 = vector.broadcast %c0_i32_169 : i32 to vector<1x256xi32>
    %406 = arith.cmpi sge, %404, %405 : vector<1x256xi32>
    %407 = arith.andi %402, %406 : vector<1x256xi1>
    %c-1_i32_170 = arith.constant -1 : i32
    %408 = vector.broadcast %c-1_i32_170 : i32 to vector<1x256xi32>
    %409 = arith.addi %1, %408 : vector<1x256xi32>
    %c16_i32_171 = arith.constant 16 : i32
    %410 = vector.broadcast %c16_i32_171 : i32 to vector<1x256xi32>
    %411 = arith.cmpi slt, %409, %410 : vector<1x256xi32>
    %412 = arith.andi %407, %411 : vector<1x256xi1>
    %cst_172 = arith.constant 0.000000e+00 : f32
    %413 = vector.shape_cast %412 : vector<1x256xi1> to vector<1x256xi1>
    %414 = vector.broadcast %413 : vector<1x256xi1> to vector<4x256xi1>
    %415 = vector.broadcast %cst_172 : f32 to vector<4x256xf32>
    %416 = arith.select %414, %393, %415 : vector<4x256xi1>, vector<4x256xf32>
    %417 = arith.addf %389, %416 : vector<4x256xf32>
    %c0_173 = arith.constant 0 : index
    %c7_174 = arith.constant 7 : index
    %418 = vector.load %arg6[%c0_173, %c7_174] : memref<4x9xf32, #tpu.memory_space<vmem>>, vector<4x1xf32>
    %c240_i32_175 = arith.constant 240 : i32
    %419 = tpu.dynamic_rotate %244 by %c240_i32_175 dim 1 : vector<4x256xf32>, i32 -> vector<4x256xf32>
    %420 = vector.broadcast %418 : vector<4x1xf32> to vector<4x256xf32>
    %421 = arith.mulf %419, %420 : vector<4x256xf32>
    %c1_i32_176 = arith.constant 1 : i32
    %422 = vector.broadcast %c1_i32_176 : i32 to vector<1x256xi32>
    %423 = arith.addi %0, %422 : vector<1x256xi32>
    %c0_i32_177 = arith.constant 0 : i32
    %424 = vector.broadcast %c0_i32_177 : i32 to vector<1x256xi32>
    %425 = arith.cmpi sge, %423, %424 : vector<1x256xi32>
    %c1_i32_178 = arith.constant 1 : i32
    %426 = vector.broadcast %c1_i32_178 : i32 to vector<1x256xi32>
    %427 = arith.addi %0, %426 : vector<1x256xi32>
    %c16_i32_179 = arith.constant 16 : i32
    %428 = vector.broadcast %c16_i32_179 : i32 to vector<1x256xi32>
    %429 = arith.cmpi slt, %427, %428 : vector<1x256xi32>
    %430 = arith.andi %425, %429 : vector<1x256xi1>
    %c0_i32_180 = arith.constant 0 : i32
    %431 = vector.broadcast %c0_i32_180 : i32 to vector<1x256xi32>
    %432 = arith.addi %1, %431 : vector<1x256xi32>
    %c0_i32_181 = arith.constant 0 : i32
    %433 = vector.broadcast %c0_i32_181 : i32 to vector<1x256xi32>
    %434 = arith.cmpi sge, %432, %433 : vector<1x256xi32>
    %435 = arith.andi %430, %434 : vector<1x256xi1>
    %c0_i32_182 = arith.constant 0 : i32
    %436 = vector.broadcast %c0_i32_182 : i32 to vector<1x256xi32>
    %437 = arith.addi %1, %436 : vector<1x256xi32>
    %c16_i32_183 = arith.constant 16 : i32
    %438 = vector.broadcast %c16_i32_183 : i32 to vector<1x256xi32>
    %439 = arith.cmpi slt, %437, %438 : vector<1x256xi32>
    %440 = arith.andi %435, %439 : vector<1x256xi1>
    %cst_184 = arith.constant 0.000000e+00 : f32
    %441 = vector.shape_cast %440 : vector<1x256xi1> to vector<1x256xi1>
    %442 = vector.broadcast %441 : vector<1x256xi1> to vector<4x256xi1>
    %443 = vector.broadcast %cst_184 : f32 to vector<4x256xf32>
    %444 = arith.select %442, %421, %443 : vector<4x256xi1>, vector<4x256xf32>
    %445 = arith.addf %417, %444 : vector<4x256xf32>
    %c0_185 = arith.constant 0 : index
    %c8_186 = arith.constant 8 : index
    %446 = vector.load %arg6[%c0_185, %c8_186] : memref<4x9xf32, #tpu.memory_space<vmem>>, vector<4x1xf32>
    %c239_i32_187 = arith.constant 239 : i32
    %447 = tpu.dynamic_rotate %244 by %c239_i32_187 dim 1 : vector<4x256xf32>, i32 -> vector<4x256xf32>
    %448 = vector.broadcast %446 : vector<4x1xf32> to vector<4x256xf32>
    %449 = arith.mulf %447, %448 : vector<4x256xf32>
    %c1_i32_188 = arith.constant 1 : i32
    %450 = vector.broadcast %c1_i32_188 : i32 to vector<1x256xi32>
    %451 = arith.addi %0, %450 : vector<1x256xi32>
    %c0_i32_189 = arith.constant 0 : i32
    %452 = vector.broadcast %c0_i32_189 : i32 to vector<1x256xi32>
    %453 = arith.cmpi sge, %451, %452 : vector<1x256xi32>
    %c1_i32_190 = arith.constant 1 : i32
    %454 = vector.broadcast %c1_i32_190 : i32 to vector<1x256xi32>
    %455 = arith.addi %0, %454 : vector<1x256xi32>
    %c16_i32_191 = arith.constant 16 : i32
    %456 = vector.broadcast %c16_i32_191 : i32 to vector<1x256xi32>
    %457 = arith.cmpi slt, %455, %456 : vector<1x256xi32>
    %458 = arith.andi %453, %457 : vector<1x256xi1>
    %c1_i32_192 = arith.constant 1 : i32
    %459 = vector.broadcast %c1_i32_192 : i32 to vector<1x256xi32>
    %460 = arith.addi %1, %459 : vector<1x256xi32>
    %c0_i32_193 = arith.constant 0 : i32
    %461 = vector.broadcast %c0_i32_193 : i32 to vector<1x256xi32>
    %462 = arith.cmpi sge, %460, %461 : vector<1x256xi32>
    %463 = arith.andi %458, %462 : vector<1x256xi1>
    %c1_i32_194 = arith.constant 1 : i32
    %464 = vector.broadcast %c1_i32_194 : i32 to vector<1x256xi32>
    %465 = arith.addi %1, %464 : vector<1x256xi32>
    %c16_i32_195 = arith.constant 16 : i32
    %466 = vector.broadcast %c16_i32_195 : i32 to vector<1x256xi32>
    %467 = arith.cmpi slt, %465, %466 : vector<1x256xi32>
    %468 = arith.andi %463, %467 : vector<1x256xi1>
    %cst_196 = arith.constant 0.000000e+00 : f32
    %469 = vector.shape_cast %468 : vector<1x256xi1> to vector<1x256xi1>
    %470 = vector.broadcast %469 : vector<1x256xi1> to vector<4x256xi1>
    %471 = vector.broadcast %cst_196 : f32 to vector<4x256xf32>
    %472 = arith.select %470, %449, %471 : vector<4x256xi1>, vector<4x256xf32>
    %473 = arith.addf %445, %472 : vector<4x256xf32>
    %474 = arith.truncf %473 : vector<4x256xf32> to vector<4x256xbf16>
    %cst_197 = arith.constant dense<0.000000e+00> : vector<8x256xf32>
    %475 = tpu.matmul %3, %474, %cst_197 {dimension_numbers = #tpu.dot_dimension_numbers<[1], [0], [0], [1], [0, 0, 1, 1], [], []>} : vector<8x4xbf16>, vector<4x256xbf16>, vector<8x256xf32> -> vector<8x256xf32>
    %476 = vector.broadcast %5 : vector<8x1xf32> to vector<8x256xf32>
    %477 = arith.addf %475, %476 : vector<8x256xf32>
    %c0_198 = arith.constant 0 : index
    %c0_199 = arith.constant 0 : index
    %c0_200 = arith.constant 0 : index
    %478 = vector.load %arg9[%c0_198, %c0_199, %c0_200] : memref<1x8x256xf32, #tpu.memory_space<vmem>>, vector<1x8x256xf32>
    %479 = vector.shape_cast %478 : vector<1x8x256xf32> to vector<8x256xf32>
    %480 = vector.shape_cast %477 : vector<8x256xf32> to vector<1x8x256xf32>
    tpu.vector_store %arg9[%c0_198, %c0_199, %c0_200], %480 {strides = array<i32>} : memref<1x8x256xf32, #tpu.memory_space<vmem>>, vector<1x8x256xf32>,
    return
  }
  func.func @transform_0(%arg0: i32) -> (i32, i32, i32, i32) {
    %c0_i32 = arith.constant 0 : i32
    %c0_i32_0 = arith.constant 0 : i32
    %c0_i32_1 = arith.constant 0 : i32
    %c0_i32_2 = arith.constant 0 : i32
    return %arg0, %c0_i32, %c0_i32_0, %c0_i32_1 : i32, i32, i32, i32
  }
  func.func @transform_1(%arg0: i32) -> (i32, i32) {
    %c0_i32 = arith.constant 0 : i32
    %c0_i32_0 = arith.constant 0 : i32
    %c0_i32_1 = arith.constant 0 : i32
    return %c0_i32, %c0_i32_0 : i32, i32
  }
  func.func @transform_2(%arg0: i32) -> (i32, i32) {
    %c0_i32 = arith.constant 0 : i32
    %c0_i32_0 = arith.constant 0 : i32
    %c0_i32_1 = arith.constant 0 : i32
    return %c0_i32, %c0_i32_0 : i32, i32
  }
  func.func @transform_3(%arg0: i32) -> (i32, i32) {
    %c0_i32 = arith.constant 0 : i32
    %c0_i32_0 = arith.constant 0 : i32
    %c0_i32_1 = arith.constant 0 : i32
    return %c0_i32, %c0_i32_0 : i32, i32
  }
  func.func @transform_4(%arg0: i32) -> (i32, i32) {
    %c0_i32 = arith.constant 0 : i32
    %c0_i32_0 = arith.constant 0 : i32
    %c0_i32_1 = arith.constant 0 : i32
    return %c0_i32, %c0_i32_0 : i32, i32
  }
  func.func @transform_5(%arg0: i32) -> (i32, i32) {
    %c0_i32 = arith.constant 0 : i32
    %c0_i32_0 = arith.constant 0 : i32
    %c0_i32_1 = arith.constant 0 : i32
    return %c0_i32, %c0_i32_0 : i32, i32
  }
  func.func @transform_6(%arg0: i32) -> (i32, i32) {
    %c0_i32 = arith.constant 0 : i32
    %c0_i32_0 = arith.constant 0 : i32
    %c0_i32_1 = arith.constant 0 : i32
    return %c0_i32, %c0_i32_0 : i32, i32
  }
  func.func @transform_7(%arg0: i32) -> (i32, i32) {
    %c0_i32 = arith.constant 0 : i32
    %c0_i32_0 = arith.constant 0 : i32
    %c0_i32_1 = arith.constant 0 : i32
    return %c0_i32, %c0_i32_0 : i32, i32
  }
  func.func @transform_8(%arg0: i32) -> (i32, i32, i32) {
    %c0_i32 = arith.constant 0 : i32
    %c0_i32_0 = arith.constant 0 : i32
    %c0_i32_1 = arith.constant 0 : i32
    return %arg0, %c0_i32, %c0_i32_0 : i32, i32, i32
  }
}

</mosaic_0001>

<llo_original>
// kernel: dual_sep_conv.1
$region0: #{dual_sep_conv.1}
  #allocation0 [shape = 'u32[]', space=smem, size = 0x4, offset = 0x4, fixed_abs, tag = 'smem constant byte address 0x4 - core index']
  #allocation1 [shape = 'u32[144,128]{1,0:T(1,128)}', space=vmem, size = 0x12000, scoped, tag = 'internal scratch']
  %s0 = inlined_call_operand.vmem [shape: f32[2,1,4,256], index: 0, kind: input, shape index: {}]
  %s1 = inlined_call_operand.vmem [shape: s32[2,256], index: 1, kind: input, shape index: {}]
  %s2 = inlined_call_operand.vmem [shape: f32[4,9], index: 2, kind: input, shape index: {}]
  %s3 = inlined_call_operand.vmem [shape: bf16[4,4], index: 3, kind: input, shape index: {}]
  %s4 = inlined_call_operand.vmem [shape: f32[4,1], index: 4, kind: input, shape index: {}]
  %s5 = inlined_call_operand.vmem [shape: f32[4,9], index: 5, kind: input, shape index: {}]
  %s6 = inlined_call_operand.vmem [shape: bf16[8,4], index: 6, kind: input, shape index: {}]
  %s7 = inlined_call_operand.vmem [shape: f32[8,1], index: 7, kind: input, shape index: {}]
  %s8 = inlined_call_operand.vmem [shape: f32[2,8,256], index: 8, kind: output, shape index: {}]
  %s9 = sld [smem:[#allocation0]]
  $region65: #{dual_sep_conv.1} parent=0
    _
  %s11 = ssub.s32 1, %s9
  %s12 = scalar_select 0, %s11, %s9
  loop: start=0, step=1, limit=4
  $region2: #{dual_sep_conv.1} parent=0 // loop_pre_header
    _
  $region3: #{dual_sep_conv.1} parent=0 // loop_header
    %s14 = sphi 0, %s18
    %p15 = scmp.ge.s32.totalorder %s14, 4
    %s24 = sphi 0, %s26
    %s27 = sphi 0, %s24
    %s28 = sphi 0, %s27
    %s44 = sphi 0, %s28
    %s48 = sphi 0, %s48
    %s50 = sphi 0, %s48
    %s51 = sphi 0, %s50
    %s65 = sphi 0, %s51
    %s69 = sphi 0, %s69
    %s71 = sphi 0, %s69
    %s72 = sphi 0, %s71
    %s86 = sphi 0, %s72
    %s90 = sphi 0, %s90
    %s92 = sphi 0, %s90
    %s93 = sphi 0, %s92
    %s107 = sphi 0, %s93
    %s111 = sphi 0, %s111
    %s113 = sphi 0, %s111
    %s114 = sphi 0, %s113
    %s128 = sphi 0, %s114
    %s132 = sphi 0, %s132
    %s134 = sphi 0, %s132
    %s135 = sphi 0, %s134
    %s149 = sphi 0, %s135
    %s153 = sphi 0, %s153
    %s155 = sphi 0, %s153
    %s156 = sphi 0, %s155
    %s170 = sphi 0, %s156
    %s174 = sphi 0, %s174
    %s176 = sphi 0, %s174
    %s177 = sphi 0, %s176
    %s191 = sphi 0, %s177
    %s197 = sphi 0, %s199
    %s200 = sphi 0, %s197
    %s201 = sphi 0, %s200
    %s217 = sphi 0, %s201
  $region4: #{dual_sep_conv.1} parent=0 // loop_header_branch
    %17 = sbr.rel (%p15) target = $region8
  $region5: #{dual_sep_conv.1} parent=0 // loop_body
    %s19 = ssub.s32 %s14, 1
    %s20 = ssub.s32 %s14, 2
    %s21 = sadd.s32 %s14, 1
    %s22 = ssub.s32 %s14, %s21
    %p23 = scmp.eq.s32.totalorder %s22, 0
    %s25 = sadd.s32 %s24, 1
    %s26 = scalar_select %p23, %s24, %s25
    %p29 = pneg %p23
    %p30 = scmp.eq.s32.totalorder %s14, 1
    %p31 = por %p29, %p30
    %p32 = scmp.ne.s32.totalorder %s24, %s27
    %p33 = scmp.eq.s32.totalorder %s14, 0
    %p34 = por %p32, %p33
    %p35 = scmp.ne.s32.totalorder %s24, %s27
    %p36 = scmp.eq.s32.totalorder %s19, 1
    %p37 = por %p35, %p36
    %p38 = scmp.ne.s32.totalorder %s27, %s28
    %p39 = scmp.eq.s32.totalorder %s19, 0
    %p40 = por %p38, %p39
    %p41 = scmp.ne.s32.totalorder %s27, %s28
    %p42 = scmp.eq.s32.totalorder %s20, 1
    %p43 = por %p41, %p42
    %p45 = scmp.ne.s32.totalorder %s28, %s44
    %p46 = scmp.eq.s32.totalorder %s20, 0
    %p47 = por %p45, %p46
    %s49 = sadd.s32 %s48, 1
    %p52 = scmp.eq.s32.totalorder %s14, 1
    %p53 = scmp.ne.s32.totalorder %s48, %s50
    %p54 = scmp.eq.s32.totalorder %s14, 0
    %p55 = por %p53, %p54
    %p56 = scmp.ne.s32.totalorder %s48, %s50
    %p57 = scmp.eq.s32.totalorder %s19, 1
    %p58 = por %p56, %p57
    %p59 = scmp.ne.s32.totalorder %s50, %s51
    %p60 = scmp.eq.s32.totalorder %s19, 0
    %p61 = por %p59, %p60
    %p62 = scmp.ne.s32.totalorder %s50, %s51
    %p63 = scmp.eq.s32.totalorder %s20, 1
    %p64 = por %p62, %p63
    %p66 = scmp.ne.s32.totalorder %s51, %s65
    %p67 = scmp.eq.s32.totalorder %s20, 0
    %p68 = por %p66, %p67
    %s70 = sadd.s32 %s69, 1
    %p73 = scmp.eq.s32.totalorder %s14, 1
    %p74 = scmp.ne.s32.totalorder %s69, %s71
    %p75 = scmp.eq.s32.totalorder %s14, 0
    %p76 = por %p74, %p75
    %p77 = scmp.ne.s32.totalorder %s69, %s71
    %p78 = scmp.eq.s32.totalorder %s19, 1
    %p79 = por %p77, %p78
    %p80 = scmp.ne.s32.totalorder %s71, %s72
    %p81 = scmp.eq.s32.totalorder %s19, 0
    %p82 = por %p80, %p81
    %p83 = scmp.ne.s32.totalorder %s71, %s72
    %p84 = scmp.eq.s32.totalorder %s20, 1
    %p85 = por %p83, %p84
    %p87 = scmp.ne.s32.totalorder %s72, %s86
    %p88 = scmp.eq.s32.totalorder %s20, 0
    %p89 = por %p87, %p88
    %s91 = sadd.s32 %s90, 1
    %p94 = scmp.eq.s32.totalorder %s14, 1
    %p95 = scmp.ne.s32.totalorder %s90, %s92
    %p96 = scmp.eq.s32.totalorder %s14, 0
    %p97 = por %p95, %p96
    %p98 = scmp.ne.s32.totalorder %s90, %s92
    %p99 = scmp.eq.s32.totalorder %s19, 1
    %p100 = por %p98, %p99
    %p101 = scmp.ne.s32.totalorder %s92, %s93
    %p102 = scmp.eq.s32.totalorder %s19, 0
    %p103 = por %p101, %p102
    %p104 = scmp.ne.s32.totalorder %s92, %s93
    %p105 = scmp.eq.s32.totalorder %s20, 1
    %p106 = por %p104, %p105
    %p108 = scmp.ne.s32.totalorder %s93, %s107
    %p109 = scmp.eq.s32.totalorder %s20, 0
    %p110 = por %p108, %p109
    %s112 = sadd.s32 %s111, 1
    %p115 = scmp.eq.s32.totalorder %s14, 1
    %p116 = scmp.ne.s32.totalorder %s111, %s113
    %p117 = scmp.eq.s32.totalorder %s14, 0
    %p118 = por %p116, %p117
    %p119 = scmp.ne.s32.totalorder %s111, %s113
    %p120 = scmp.eq.s32.totalorder %s19, 1
    %p121 = por %p119, %p120
    %p122 = scmp.ne.s32.totalorder %s113, %s114
    %p123 = scmp.eq.s32.totalorder %s19, 0
    %p124 = por %p122, %p123
    %p125 = scmp.ne.s32.totalorder %s113, %s114
    %p126 = scmp.eq.s32.totalorder %s20, 1
    %p127 = por %p125, %p126
    %p129 = scmp.ne.s32.totalorder %s114, %s128
    %p130 = scmp.eq.s32.totalorder %s20, 0
    %p131 = por %p129, %p130
    %s133 = sadd.s32 %s132, 1
    %p136 = scmp.eq.s32.totalorder %s14, 1
    %p137 = scmp.ne.s32.totalorder %s132, %s134
    %p138 = scmp.eq.s32.totalorder %s14, 0
    %p139 = por %p137, %p138
    %p140 = scmp.ne.s32.totalorder %s132, %s134
    %p141 = scmp.eq.s32.totalorder %s19, 1
    %p142 = por %p140, %p141
    %p143 = scmp.ne.s32.totalorder %s134, %s135
    %p144 = scmp.eq.s32.totalorder %s19, 0
    %p145 = por %p143, %p144
    %p146 = scmp.ne.s32.totalorder %s134, %s135
    %p147 = scmp.eq.s32.totalorder %s20, 1
    %p148 = por %p146, %p147
    %p150 = scmp.ne.s32.totalorder %s135, %s149
    %p151 = scmp.eq.s32.totalorder %s20, 0
    %p152 = por %p150, %p151
    %s154 = sadd.s32 %s153, 1
    %p157 = scmp.eq.s32.totalorder %s14, 1
    %p158 = scmp.ne.s32.totalorder %s153, %s155
    %p159 = scmp.eq.s32.totalorder %s14, 0
    %p160 = por %p158, %p159
    %p161 = scmp.ne.s32.totalorder %s153, %s155
    %p162 = scmp.eq.s32.totalorder %s19, 1
    %p163 = por %p161, %p162
    %p164 = scmp.ne.s32.totalorder %s155, %s156
    %p165 = scmp.eq.s32.totalorder %s19, 0
    %p166 = por %p164, %p165
    %p167 = scmp.ne.s32.totalorder %s155, %s156
    %p168 = scmp.eq.s32.totalorder %s20, 1
    %p169 = por %p167, %p168
    %p171 = scmp.ne.s32.totalorder %s156, %s170
    %p172 = scmp.eq.s32.totalorder %s20, 0
    %p173 = por %p171, %p172
    %s175 = sadd.s32 %s174, 1
    %p178 = scmp.eq.s32.totalorder %s14, 1
    %p179 = scmp.ne.s32.totalorder %s174, %s176
    %p180 = scmp.eq.s32.totalorder %s14, 0
    %p181 = por %p179, %p180
    %p182 = scmp.ne.s32.totalorder %s174, %s176
    %p183 = scmp.eq.s32.totalorder %s19, 1
    %p184 = por %p182, %p183
    %p185 = scmp.ne.s32.totalorder %s176, %s177
    %p186 = scmp.eq.s32.totalorder %s19, 0
    %p187 = por %p185, %p186
    %p188 = scmp.ne.s32.totalorder %s176, %s177
    %p189 = scmp.eq.s32.totalorder %s20, 1
    %p190 = por %p188, %p189
    %p192 = scmp.ne.s32.totalorder %s177, %s191
    %p193 = scmp.eq.s32.totalorder %s20, 0
    %p194 = por %p192, %p193
    %s195 = ssub.s32 %s14, %s21
    %p196 = scmp.eq.s32.totalorder %s195, 0
    %s198 = sadd.s32 %s197, 1
    %s199 = scalar_select %p196, %s197, %s198
    %p202 = pneg %p196
    %p203 = scmp.eq.s32.totalorder %s14, 1
    %p204 = por %p202, %p203
    %p205 = scmp.ne.s32.totalorder %s197, %s200
    %p206 = scmp.eq.s32.totalorder %s14, 0
    %p207 = por %p205, %p206
    %p208 = scmp.ne.s32.totalorder %s197, %s200
    %p209 = scmp.eq.s32.totalorder %s19, 1
    %p210 = por %p208, %p209
    %p211 = scmp.ne.s32.totalorder %s200, %s201
    %p212 = scmp.eq.s32.totalorder %s19, 0
    %p213 = por %p211, %p212
    %p214 = scmp.ne.s32.totalorder %s200, %s201
    %p215 = scmp.eq.s32.totalorder %s20, 1
    %p216 = por %p214, %p215
    %p218 = scmp.ne.s32.totalorder %s201, %s217
    %p219 = scmp.eq.s32.totalorder %s20, 0
    %p220 = por %p218, %p219
    %p221 = scmp.le.s32.totalorder 1, %s14
    %p222 = scmp.lt.s32.totalorder %s14, 3
    %p223 = pnand %p221, %p222
    %p224 = pneg %p223
    // Predicated region
    $region9: #{dual_sep_conv.1} parent=5 // pred_check
      _
    $region10: #{dual_sep_conv.1} parent=5 // pred_check_branch
      %226 = sbr.rel (%p223) target = $region12
    $region11: #{dual_sep_conv.1} parent=5 // pred_region
      %s227 = ssub.s32 %s14, 1
      // Predicated region
      $region13: #{dual_sep_conv.1} parent=11 // pred_check
        %p228 = pneg %p61
      $region14: #{dual_sep_conv.1} parent=11 // pred_check_branch
        %230 = sbr.rel (%p228) target = $region16
      $region15: #{dual_sep_conv.1} parent=11 // pred_region
        _
      $region16: #{dual_sep_conv.1} parent=11 // pred_fallthru
        _
      // Predicated region
      $region17: #{dual_sep_conv.1} parent=11 // pred_check
        %p231 = pneg %p82
      $region18: #{dual_sep_conv.1} parent=11 // pred_check_branch
        %233 = sbr.rel (%p231) target = $region20
      $region19: #{dual_sep_conv.1} parent=11 // pred_region
        _
      $region20: #{dual_sep_conv.1} parent=11 // pred_fallthru
        _
      // Predicated region
      $region21: #{dual_sep_conv.1} parent=11 // pred_check
        %p234 = pneg %p103
      $region22: #{dual_sep_conv.1} parent=11 // pred_check_branch
        %236 = sbr.rel (%p234) target = $region24
      $region23: #{dual_sep_conv.1} parent=11 // pred_region
        _
      $region24: #{dual_sep_conv.1} parent=11 // pred_fallthru
        _
      // Predicated region
      $region25: #{dual_sep_conv.1} parent=11 // pred_check
        %p237 = pneg %p124
      $region26: #{dual_sep_conv.1} parent=11 // pred_check_branch
        %239 = sbr.rel (%p237) target = $region28
      $region27: #{dual_sep_conv.1} parent=11 // pred_region
        _
      $region28: #{dual_sep_conv.1} parent=11 // pred_fallthru
        _
      // Predicated region
      $region29: #{dual_sep_conv.1} parent=11 // pred_check
        %p240 = pneg %p145
      $region30: #{dual_sep_conv.1} parent=11 // pred_check_branch
        %242 = sbr.rel (%p240) target = $region32
      $region31: #{dual_sep_conv.1} parent=11 // pred_region
        _
      $region32: #{dual_sep_conv.1} parent=11 // pred_fallthru
        _
      // Predicated region
      $region33: #{dual_sep_conv.1} parent=11 // pred_check
        %p243 = pneg %p166
      $region34: #{dual_sep_conv.1} parent=11 // pred_check_branch
        %245 = sbr.rel (%p243) target = $region36
      $region35: #{dual_sep_conv.1} parent=11 // pred_region
        _
      $region36: #{dual_sep_conv.1} parent=11 // pred_fallthru
        _
      // Predicated region
      $region37: #{dual_sep_conv.1} parent=11 // pred_check
        %p246 = pneg %p187
      $region38: #{dual_sep_conv.1} parent=11 // pred_check_branch
        %248 = sbr.rel (%p246) target = $region40
      $region39: #{dual_sep_conv.1} parent=11 // pred_region
        _
      $region40: #{dual_sep_conv.1} parent=11 // pred_fallthru
        _
    $region12: #{dual_sep_conv.1} parent=5 // pred_fallthru
      _
    %p249 = scmp.lt.s32.totalorder %s14, 2
    // Predicated region
    $region41: #{dual_sep_conv.1} parent=5 // pred_check
      %p250 = pneg %p249
    $region42: #{dual_sep_conv.1} parent=5 // pred_check_branch
      %252 = sbr.rel (%p250) target = $region44
    $region43: #{dual_sep_conv.1} parent=5 // pred_region
      // Predicated region
      $region45: #{dual_sep_conv.1} parent=43 // pred_check
        %p253 = pneg %p34
      $region46: #{dual_sep_conv.1} parent=43 // pred_check_branch
        %255 = sbr.rel (%p253) target = $region48
      $region47: #{dual_sep_conv.1} parent=43 // pred_region
        %p256 = scmp.lt.s32.totalorder %s14, 1
        %s257 = scalar_select %p256, %s14, 1
        %s258 = smul.addr %s257, 2
        %s259 = smul.addr %s258, 4
        %s260 = scalar_lea.vmem %s0, %s259
      $region48: #{dual_sep_conv.1} parent=43 // pred_fallthru
        _
    $region44: #{dual_sep_conv.1} parent=5 // pred_fallthru
      _
    %p261 = scmp.le.s32.totalorder 1, %s14
    %p262 = scmp.lt.s32.totalorder %s14, 3
    %p263 = pnand %p261, %p262
    %p264 = pneg %p263
    // Predicated region
    $region49: #{dual_sep_conv.1} parent=5 // pred_check
      _
    $region50: #{dual_sep_conv.1} parent=5 // pred_check_branch
      %266 = sbr.rel (%p263) target = $region52
    $region51: #{dual_sep_conv.1} parent=5 // pred_region
      %s267 = ssub.s32 %s14, 1
      %p268 = scmp.lt.s32.totalorder %s19, 1
      %s269 = scalar_select %p268, %s19, 1
      %s270 = smul.addr %s269, 2
      %s271 = smul.addr %s270, 4
      %s272 = scalar_lea.vmem %s0, %s271
      %p273 = pneg %p40
      %p274 = pneg %p37
      %p275 = pneg %p61
      %p276 = pneg %p58
      %p277 = pneg %p82
      %p278 = pneg %p79
      %p279 = pneg %p103
      %p280 = pneg %p100
      %p281 = pneg %p124
      %p282 = pneg %p121
      %p283 = pneg %p145
      %p284 = pneg %p142
      %p285 = pneg %p166
      %p286 = pneg %p163
      %p287 = pneg %p187
      %p288 = pneg %p184
      %p289 = pneg %p213
      %p290 = pneg %p210
      %p291 = scmp.lt.s32.totalorder %s19, 1
      %s292 = scalar_select %p291, %s19, 1
      %s293 = smul.addr %s292, 2
      %s294 = smul.addr %s293, 8
      %s295 = scalar_lea.vmem %s8, %s294
      %p296 = scmp.lt.s32.totalorder %s19, 1
      %s297 = scalar_select %p296, %s19, 1
      %s298 = smul.addr %s297, 2
      %s299 = smul.addr %s298, 4
      %s300 = scalar_lea.vmem %s0, %s299
      %p301 = scmp.lt.s32.totalorder %s19, 1
      %s302 = scalar_select %p301, %s19, 1
      %s303 = smul.addr %s302, 2
      %s304 = smul.addr %s303, 8
      %s305 = scalar_lea.vmem %s8, %s304
      %v307 = vld [vmem:[%s1] ss:$2 sm:$0x3]
      %s308 = scalar_lea.vmem %s1, 1
      %v309 = vld [vmem:[%s308] ss:$2 sm:$0x3]
      %v310 = vld [vmem:[%s3] sm:$0x3]
      %v311 = vld [vmem:[%s6] sm:$0xf]
      %v312 = vld [vmem:[%s4] sm:$0xf]
      %v313 = vld [vmem:[%s7] sm:$0xff]
      %v314 = vld [vmem:[%s300] sm:$0xff]
      %v315 = vmax.f32 %v314, 0.0
      %v316 = vld [vmem:[%s2] sm:$0xf]
      %v318 = vcombine.high %v315, %v315
      %320 = vrot.lane.b32.xlu0 %v315, 17
      %v321 = vpop.permute.xlu0 %320
      %322 = vrot.lane.b32.xlu0 %v318, 17
      %v323 = vpop.permute.xlu0 %322
      %v324 = vlaneseq
      %v325 = vand.u32 %v324, 127
      %vm326 = vcmp.lt.s32.totalorder %v325, 17
      %v327 = vsel %vm326, %v321, %v323
      %v328 = vsel %vm326, %v323, %v321
      %330 = vset.pattern.permute.xlu0 0
      %331 = vperm.xlu0 %330, %v316
      %v332 = vpop.permute.xlu0 %331
      %v334 = vmul.f32 %v328, %v332
      %v335 = vmul.f32 %v327, %v332
      %v336 = vadd.s32 %v307, 4294967295
      %vm337 = vcmp.ge.s32.totalorder %v336, 0
      %vm338 = vcmp.lt.s32.totalorder %v336, 16
      %vm339 = vmand %vm337, %vm338
      %v340 = vadd.s32 %v309, 4294967295
      %vm341 = vcmp.ge.s32.totalorder %v340, 0
      %vm342 = vmand %vm339, %vm341
      %vm343 = vcmp.lt.s32.totalorder %v340, 16
      %vm344 = vmand %vm342, %vm343
      %v345 = vsel %vm344, 1, 0
      %v346 = vlaneseq
      %v347 = vshrl.u32 %v346, 7
      %v348 = vsub.s32 0, %v347
      %v349 = vrot.slane %v345, %v348
      %v350 = vlaneseq
      %v351 = vshrl.u32 %v350, 7
      %v352 = vsub.s32 1, %v351
      %v353 = vrot.slane %v345, %v352
      %vm354 = vcmp.eq.s32.totalorder %v349, 1
      %vm355 = vcmp.eq.s32.totalorder %v353, 1
      %v356 = vsel %vm354, %v334, 0.0
      %v357 = vsel %vm355, %v335, 0.0
      %v358 = vadd.f32 %v356, 0.0
      %v359 = vadd.f32 %v357, 0.0
      %v360 = vld [vmem:[%s2] sm:$0xf]
      %361 = vrot.lane.b32.xlu0 %v315, 16
      %v362 = vpop.permute.xlu0 %361
      %363 = vrot.lane.b32.xlu0 %v318, 16
      %v364 = vpop.permute.xlu0 %363
      %vm365 = vcmp.lt.s32.totalorder %v325, 16
      %v366 = vsel %vm365, %v362, %v364
      %v367 = vsel %vm365, %v364, %v362
      %369 = vset.pattern.permute.xlu0 1
      %370 = vperm.xlu0 %369, %v360
      %v371 = vpop.permute.xlu0 %370
      %v373 = vmul.f32 %v367, %v371
      %v374 = vmul.f32 %v366, %v371
      %vm375 = vcmp.ge.s32.totalorder %v309, 0
      %vm376 = vmand %vm339, %vm375
      %vm377 = vcmp.lt.s32.totalorder %v309, 16
      %vm378 = vmand %vm376, %vm377
      %v379 = vsel %vm378, 1, 0
      %v380 = vlaneseq
      %v381 = vshrl.u32 %v380, 7
      %v382 = vsub.s32 0, %v381
      %v383 = vrot.slane %v379, %v382
      %v384 = vlaneseq
      %v385 = vshrl.u32 %v384, 7
      %v386 = vsub.s32 1, %v385
      %v387 = vrot.slane %v379, %v386
      %vm388 = vcmp.eq.s32.totalorder %v383, 1
      %vm389 = vcmp.eq.s32.totalorder %v387, 1
      %v390 = vsel %vm388, %v373, 0.0
      %v391 = vsel %vm389, %v374, 0.0
      %v392 = vadd.f32 %v358, %v390
      %v393 = vadd.f32 %v359, %v391
      %v394 = vld [vmem:[%s2] sm:$0xf]
      %395 = vrot.lane.b32.xlu0 %v315, 15
      %v396 = vpop.permute.xlu0 %395
      %397 = vrot.lane.b32.xlu0 %v318, 15
      %v398 = vpop.permute.xlu0 %397
      %vm399 = vcmp.lt.s32.totalorder %v325, 15
      %v400 = vsel %vm399, %v396, %v398
      %v401 = vsel %vm399, %v398, %v396
      %403 = vset.pattern.permute.xlu0 2
      %404 = vperm.xlu0 %403, %v394
      %v405 = vpop.permute.xlu0 %404
      %v407 = vmul.f32 %v401, %v405
      %v408 = vmul.f32 %v400, %v405
      %v409 = vadd.s32 %v309, 1
      %vm410 = vcmp.ge.s32.totalorder %v409, 0
      %vm411 = vmand %vm339, %vm410
      %vm412 = vcmp.lt.s32.totalorder %v409, 16
      %vm413 = vmand %vm411, %vm412
      %v414 = vsel %vm413, 1, 0
      %v415 = vlaneseq
      %v416 = vshrl.u32 %v415, 7
      %v417 = vsub.s32 0, %v416
      %v418 = vrot.slane %v414, %v417
      %v419 = vlaneseq
      %v420 = vshrl.u32 %v419, 7
      %v421 = vsub.s32 1, %v420
      %v422 = vrot.slane %v414, %v421
      %vm423 = vcmp.eq.s32.totalorder %v418, 1
      %vm424 = vcmp.eq.s32.totalorder %v422, 1
      %v425 = vsel %vm423, %v407, 0.0
      %v426 = vsel %vm424, %v408, 0.0
      %v427 = vadd.f32 %v392, %v425
      %v428 = vadd.f32 %v393, %v426
      %v429 = vld [vmem:[%s2] sm:$0xf]
      %430 = vrot.lane.b32.xlu0 %v315, 1
      %v431 = vpop.permute.xlu0 %430
      %432 = vrot.lane.b32.xlu0 %v318, 1
      %v433 = vpop.permute.xlu0 %432
      %vm434 = vcmp.lt.s32.totalorder %v325, 1
      %v435 = vsel %vm434, %v431, %v433
      %v436 = vsel %vm434, %v433, %v431
      %438 = vset.pattern.permute.xlu0 3
      %439 = vperm.xlu0 %438, %v429
      %v440 = vpop.permute.xlu0 %439
      %v442 = vmul.f32 %v436, %v440
      %v443 = vmul.f32 %v435, %v440
      %vm444 = vcmp.ge.s32.totalorder %v307, 0
      %vm445 = vcmp.lt.s32.totalorder %v307, 16
      %vm446 = vmand %vm444, %vm445
      %vm447 = vmand %vm446, %vm341
      %vm448 = vmand %vm447, %vm343
      %v449 = vsel %vm448, 1, 0
      %v450 = vlaneseq
      %v451 = vshrl.u32 %v450, 7
      %v452 = vsub.s32 0, %v451
      %v453 = vrot.slane %v449, %v452
      %v454 = vlaneseq
      %v455 = vshrl.u32 %v454, 7
      %v456 = vsub.s32 1, %v455
      %v457 = vrot.slane %v449, %v456
      %vm458 = vcmp.eq.s32.totalorder %v453, 1
      %vm459 = vcmp.eq.s32.totalorder %v457, 1
      %v460 = vsel %vm458, %v442, 0.0
      %v461 = vsel %vm459, %v443, 0.0
      %v462 = vadd.f32 %v427, %v460
      %v463 = vadd.f32 %v428, %v461
      %v464 = vld [vmem:[%s2] sm:$0xf]
      %466 = vset.pattern.permute.xlu0 4
      %467 = vperm.xlu0 %466, %v464
      %v468 = vpop.permute.xlu0 %467
      %v470 = vunpack.c.l.s4 839922192
      %v471 = vunpack.c.0.s8 %v470
      %v472 = vlaneseq
      %v473 = vshrl.u32 %v472, 7
      %v474 = vsub.s32 %v471, %v473
      %v475 = vrot.slane %v468, %v474
      %v477 = vmul.f32 %v315, %v475
      %v479 = vcombine.high %v477, %v477
      %v481 = vadd.f32 %v462, %v477
      %v482 = vadd.f32 %v463, %v479
      %v483 = vld [vmem:[%s2] sm:$0xf]
      %484 = vrot.lane.b32.xlu0 %v315, 127
      %v485 = vpop.permute.xlu0 %484
      %486 = vrot.lane.b32.xlu0 %v318, 127
      %v487 = vpop.permute.xlu0 %486
      %vm488 = vcmp.lt.s32.totalorder %v325, 127
      %v489 = vsel %vm488, %v485, %v487
      %v490 = vsel %vm488, %v487, %v485
      %492 = vset.pattern.permute.xlu0 5
      %493 = vperm.xlu0 %492, %v483
      %v494 = vpop.permute.xlu0 %493
      %v496 = vmul.f32 %v489, %v494
      %v497 = vmul.f32 %v490, %v494
      %vm498 = vmand %vm446, %vm410
      %vm499 = vmand %vm498, %vm412
      %v500 = vsel %vm499, 1, 0
      %v501 = vlaneseq
      %v502 = vshrl.u32 %v501, 7
      %v503 = vsub.s32 0, %v502
      %v504 = vrot.slane %v500, %v503
      %v505 = vlaneseq
      %v506 = vshrl.u32 %v505, 7
      %v507 = vsub.s32 1, %v506
      %v508 = vrot.slane %v500, %v507
      %vm509 = vcmp.eq.s32.totalorder %v504, 1
      %vm510 = vcmp.eq.s32.totalorder %v508, 1
      %v511 = vsel %vm509, %v496, 0.0
      %v512 = vsel %vm510, %v497, 0.0
      %v513 = vadd.f32 %v481, %v511
      %v514 = vadd.f32 %v482, %v512
      %v515 = vld [vmem:[%s2] sm:$0xf]
      %516 = vrot.lane.b32.xlu0 %v315, 113
      %v517 = vpop.permute.xlu0 %516
      %518 = vrot.lane.b32.xlu0 %v318, 113
      %v519 = vpop.permute.xlu0 %518
      %vm520 = vcmp.lt.s32.totalorder %v325, 113
      %v521 = vsel %vm520, %v517, %v519
      %v522 = vsel %vm520, %v519, %v517
      %524 = vset.pattern.permute.xlu0 6
      %525 = vperm.xlu0 %524, %v515
      %v526 = vpop.permute.xlu0 %525
      %v528 = vmul.f32 %v521, %v526
      %v529 = vmul.f32 %v522, %v526
      %v530 = vadd.s32 %v307, 1
      %vm531 = vcmp.ge.s32.totalorder %v530, 0
      %vm532 = vcmp.lt.s32.totalorder %v530, 16
      %vm533 = vmand %vm531, %vm532
      %vm534 = vmand %vm533, %vm341
      %vm535 = vmand %vm534, %vm343
      %v536 = vsel %vm535, 1, 0
      %v537 = vlaneseq
      %v538 = vshrl.u32 %v537, 7
      %v539 = vsub.s32 0, %v538
      %v540 = vrot.slane %v536, %v539
      %v541 = vlaneseq
      %v542 = vshrl.u32 %v541, 7
      %v543 = vsub.s32 1, %v542
      %v544 = vrot.slane %v536, %v543
      %vm545 = vcmp.eq.s32.totalorder %v540, 1
      %vm546 = vcmp.eq.s32.totalorder %v544, 1
      %v547 = vsel %vm545, %v528, 0.0
      %v548 = vsel %vm546, %v529, 0.0
      %v549 = vadd.f32 %v513, %v547
      %v550 = vadd.f32 %v514, %v548
      %v551 = vld [vmem:[%s2] sm:$0xf]
      %552 = vrot.lane.b32.xlu0 %v315, 112
      %v553 = vpop.permute.xlu0 %552
      %554 = vrot.lane.b32.xlu0 %v318, 112
      %v555 = vpop.permute.xlu0 %554
      %vm556 = vcmp.lt.s32.totalorder %v325, 112
      %v557 = vsel %vm556, %v553, %v555
      %v558 = vsel %vm556, %v555, %v553
      %560 = vset.pattern.permute.xlu0 7
      %561 = vperm.xlu0 %560, %v551
      %v562 = vpop.permute.xlu0 %561
      %v564 = vmul.f32 %v557, %v562
      %v565 = vmul.f32 %v558, %v562
      %vm566 = vmand %vm533, %vm375
      %vm567 = vmand %vm566, %vm377
      %v568 = vsel %vm567, 1, 0
      %v569 = vlaneseq
      %v570 = vshrl.u32 %v569, 7
      %v571 = vsub.s32 0, %v570
      %v572 = vrot.slane %v568, %v571
      %v573 = vlaneseq
      %v574 = vshrl.u32 %v573, 7
      %v575 = vsub.s32 1, %v574
      %v576 = vrot.slane %v568, %v575
      %vm577 = vcmp.eq.s32.totalorder %v572, 1
      %vm578 = vcmp.eq.s32.totalorder %v576, 1
      %v579 = vsel %vm577, %v564, 0.0
      %v580 = vsel %vm578, %v565, 0.0
      %v581 = vadd.f32 %v549, %v579
      %v582 = vadd.f32 %v550, %v580
      %v583 = vld [vmem:[%s2] sm:$0xf]
      %584 = vrot.lane.b32.xlu0 %v315, 111
      %v585 = vpop.permute.xlu0 %584
      %586 = vrot.lane.b32.xlu0 %v318, 111
      %v587 = vpop.permute.xlu0 %586
      %vm588 = vcmp.lt.s32.totalorder %v325, 111
      %v589 = vsel %vm588, %v585, %v587
      %v590 = vsel %vm588, %v587, %v585
      %592 = vset.pattern.permute.xlu0 8
      %593 = vperm.xlu0 %592, %v583
      %v594 = vpop.permute.xlu0 %593
      %v596 = vmul.f32 %v589, %v594
      %v597 = vmul.f32 %v590, %v594
      %vm598 = vmand %vm533, %vm410
      %vm599 = vmand %vm598, %vm412
      %v600 = vsel %vm599, 1, 0
      %v601 = vlaneseq
      %v602 = vshrl.u32 %v601, 7
      %v603 = vsub.s32 0, %v602
      %v604 = vrot.slane %v600, %v603
      %v605 = vlaneseq
      %v606 = vshrl.u32 %v605, 7
      %v607 = vsub.s32 1, %v606
      %v608 = vrot.slane %v600, %v607
      %vm609 = vcmp.eq.s32.totalorder %v604, 1
      %vm610 = vcmp.eq.s32.totalorder %v608, 1
      %v611 = vsel %vm609, %v596, 0.0
      %v612 = vsel %vm610, %v597, 0.0
      %v613 = vadd.f32 %v581, %v611
      %v614 = vadd.f32 %v582, %v612
      %v615 = vpack.c.bf16 %v613, %v613
      %v616 = vpack.c.bf16 %v614, %v614
      %618 = vset.pattern.permute.xlu0 0
      %619 = vperm.xlu0 %618, %v312
      %v620 = vpop.permute.xlu0 %619
      %vm622 = vcmask 31744
      %v624 = vsel %vm622, %v310, 0
      %vm626 = vcmask 1041408
      %v628 = vsel %vm626, %v615, 0
      %v631 = vsel %vm626, %v616, 0
      %633 = vmatprep.subr.bf16.mxu0 0
      %634 = vmatpush1.bf16.msra.mxu0 0
      %635 = vmatprep.subr.bf16.mxu0 0
      %636 = vmatpush1.bf16.msra.mxu0 0
      %637 = vmatprep.subr.bf16.mxu0 0
      %638 = vmatpush1.bf16.msra.mxu0 0
      %639 = vmatprep.subr.bf16.mxu0 0
      %640 = vmatpush1.bf16.msra.mxu0 0
      %641 = vmatprep.subr.bf16.mxu0 0
      %642 = vmatpush1.bf16.msra.mxu0 0
      %643 = vmatprep.subr.bf16.mxu0 0
      %644 = vmatpush1.bf16.msra.mxu0 0
      %645 = vmatprep.subr.bf16.mxu0 0
      %646 = vmatpush1.bf16.msra.mxu0 0
      %647 = vmatprep.subr.bf16.mxu0 %v631
      %648 = vmatpush1.bf16.msra.mxu0 %v628
      %649 = vmatprep.subr.bf16.mxu0 0
      %650 = vmatpush2.bf16.msra.mxu0 0
      %651 = vmatprep.subr.bf16.mxu0 0
      %652 = vmatpush2.bf16.msra.mxu0 0
      %653 = vmatprep.subr.bf16.mxu0 0
      %654 = vmatpush2.bf16.msra.mxu0 0
      %655 = vmatprep.subr.bf16.mxu0 0
      %656 = vmatpush2.bf16.msra.mxu0 0
      %657 = vmatprep.subr.bf16.mxu0 0
      %658 = vmatpush2.bf16.msra.mxu0 0
      %659 = vmatprep.subr.bf16.mxu0 0
      %660 = vmatpush2.bf16.msra.mxu0 0
      %661 = vmatprep.subr.bf16.mxu0 0
      %662 = vmatpush2.bf16.msra.mxu0 0
      %663 = vmatprep.subr.bf16.mxu0 0
      %664 = vmatpush2.bf16.msra.mxu0 0
      %665 = vmatprep.mubr.bf16.mxu0 0
      %666 = vmatmul.mubr.bf16.gmra.mxu0 %v624
      %v667 = vpop.f32.mrf.mxu0
      %v668 = vadd.f32 %v620, %v667
      %v669 = vpop.f32.mrf.mxu0
      %v670 = vadd.f32 %v620, %v669
      %v671 = vpop.f32.mrf.mxu0
      %v672 = vpop.f32.mrf.mxu0
      %673 = vdwg.mxu0
      %v674 = vmax.f32 %v668, 0.0
      %v675 = vmax.f32 %v670, 0.0
      %v676 = vld [vmem:[%s5] sm:$0xf]
      %677 = vrot.lane.b32.xlu0 %v674, 17
      %v678 = vpop.permute.xlu0 %677
      %679 = vrot.lane.b32.xlu0 %v675, 17
      %v680 = vpop.permute.xlu0 %679
      %v681 = vsel %vm326, %v678, %v680
      %v682 = vsel %vm326, %v680, %v678
      %684 = vset.pattern.permute.xlu0 0
      %685 = vperm.xlu0 %684, %v676
      %v686 = vpop.permute.xlu0 %685
      %v688 = vmul.f32 %v682, %v686
      %v689 = vmul.f32 %v681, %v686
      %v690 = vsel %vm354, %v688, 0.0
      %v691 = vsel %vm355, %v689, 0.0
      %v692 = vadd.f32 %v690, 0.0
      %v693 = vadd.f32 %v691, 0.0
      %694 = vrot.lane.b32.xlu0 %v674, 16
      %v695 = vpop.permute.xlu0 %694
      %696 = vrot.lane.b32.xlu0 %v675, 16
      %v697 = vpop.permute.xlu0 %696
      %v698 = vsel %vm365, %v695, %v697
      %v699 = vsel %vm365, %v697, %v695
      %700 = vset.pattern.permute.xlu0 1
      %701 = vperm.xlu0 %700, %v676
      %v702 = vpop.permute.xlu0 %701
      %v704 = vmul.f32 %v699, %v702
      %v705 = vmul.f32 %v698, %v702
      %v706 = vsel %vm388, %v704, 0.0
      %v707 = vsel %vm389, %v705, 0.0
      %v708 = vadd.f32 %v692, %v706
      %v709 = vadd.f32 %v693, %v707
      %710 = vrot.lane.b32.xlu0 %v674, 15
      %v711 = vpop.permute.xlu0 %710
      %712 = vrot.lane.b32.xlu0 %v675, 15
      %v713 = vpop.permute.xlu0 %712
      %v714 = vsel %vm399, %v711, %v713
      %v715 = vsel %vm399, %v713, %v711
      %716 = vset.pattern.permute.xlu0 2
      %717 = vperm.xlu0 %716, %v676
      %v718 = vpop.permute.xlu0 %717
      %v720 = vmul.f32 %v715, %v718
      %v721 = vmul.f32 %v714, %v718
      %v722 = vsel %vm423, %v720, 0.0
      %v723 = vsel %vm424, %v721, 0.0
      %v724 = vadd.f32 %v708, %v722
      %v725 = vadd.f32 %v709, %v723
      %726 = vrot.lane.b32.xlu0 %v674, 1
      %v727 = vpop.permute.xlu0 %726
      %728 = vrot.lane.b32.xlu0 %v675, 1
      %v729 = vpop.permute.xlu0 %728
      %v730 = vsel %vm434, %v727, %v729
      %v731 = vsel %vm434, %v729, %v727
      %732 = vset.pattern.permute.xlu0 3
      %733 = vperm.xlu0 %732, %v676
      %v734 = vpop.permute.xlu0 %733
      %v736 = vmul.f32 %v731, %v734
      %v737 = vmul.f32 %v730, %v734
      %v738 = vsel %vm458, %v736, 0.0
      %v739 = vsel %vm459, %v737, 0.0
      %v740 = vadd.f32 %v724, %v738
      %v741 = vadd.f32 %v725, %v739
      %742 = vset.pattern.permute.xlu0 4
      %743 = vperm.xlu0 %742, %v676
      %v744 = vpop.permute.xlu0 %743
      %v746 = vmul.f32 %v674, %v744
      %v747 = vmul.f32 %v675, %v744
      %v748 = vadd.f32 %v740, %v746
      %v749 = vadd.f32 %v741, %v747
      %750 = vrot.lane.b32.xlu0 %v674, 127
      %v751 = vpop.permute.xlu0 %750
      %752 = vrot.lane.b32.xlu0 %v675, 127
      %v753 = vpop.permute.xlu0 %752
      %v754 = vsel %vm488, %v751, %v753
      %v755 = vsel %vm488, %v753, %v751
      %756 = vset.pattern.permute.xlu0 5
      %757 = vperm.xlu0 %756, %v676
      %v758 = vpop.permute.xlu0 %757
      %v760 = vmul.f32 %v754, %v758
      %v761 = vmul.f32 %v755, %v758
      %v762 = vsel %vm509, %v760, 0.0
      %v763 = vsel %vm510, %v761, 0.0
      %v764 = vadd.f32 %v748, %v762
      %v765 = vadd.f32 %v749, %v763
      %766 = vrot.lane.b32.xlu0 %v674, 113
      %v767 = vpop.permute.xlu0 %766
      %768 = vrot.lane.b32.xlu0 %v675, 113
      %v769 = vpop.permute.xlu0 %768
      %v770 = vsel %vm520, %v767, %v769
      %v771 = vsel %vm520, %v769, %v767
      %772 = vset.pattern.permute.xlu0 6
      %773 = vperm.xlu0 %772, %v676
      %v774 = vpop.permute.xlu0 %773
      %v776 = vmul.f32 %v770, %v774
      %v777 = vmul.f32 %v771, %v774
      %v778 = vsel %vm545, %v776, 0.0
      %v779 = vsel %vm546, %v777, 0.0
      %v780 = vadd.f32 %v764, %v778
      %v781 = vadd.f32 %v765, %v779
      %782 = vrot.lane.b32.xlu0 %v674, 112
      %v783 = vpop.permute.xlu0 %782
      %784 = vrot.lane.b32.xlu0 %v675, 112
      %v785 = vpop.permute.xlu0 %784
      %v786 = vsel %vm556, %v783, %v785
      %v787 = vsel %vm556, %v785, %v783
      %788 = vset.pattern.permute.xlu0 7
      %789 = vperm.xlu0 %788, %v676
      %v790 = vpop.permute.xlu0 %789
      %v792 = vmul.f32 %v786, %v790
      %v793 = vmul.f32 %v787, %v790
      %v794 = vsel %vm577, %v792, 0.0
      %v795 = vsel %vm578, %v793, 0.0
      %v796 = vadd.f32 %v780, %v794
      %v797 = vadd.f32 %v781, %v795
      %798 = vrot.lane.b32.xlu0 %v674, 111
      %v799 = vpop.permute.xlu0 %798
      %800 = vrot.lane.b32.xlu0 %v675, 111
      %v801 = vpop.permute.xlu0 %800
      %v802 = vsel %vm588, %v799, %v801
      %v803 = vsel %vm588, %v801, %v799
      %804 = vset.pattern.permute.xlu0 8
      %805 = vperm.xlu0 %804, %v676
      %v806 = vpop.permute.xlu0 %805
      %v808 = vmul.f32 %v802, %v806
      %v809 = vmul.f32 %v803, %v806
      %v810 = vsel %vm609, %v808, 0.0
      %v811 = vsel %vm610, %v809, 0.0
      %v812 = vadd.f32 %v796, %v810
      %v813 = vadd.f32 %v797, %v811
      %v814 = vpack.c.bf16 %v812, %v812
      %v815 = vpack.c.bf16 %v813, %v813
      %817 = vset.pattern.permute.xlu0 0
      %818 = vperm.xlu0 %817, %v313
      %v819 = vpop.permute.xlu0 %818
      %v822 = vsel %vm622, %v311, 0
      %v825 = vsel %vm626, %v814, 0
      %v828 = vsel %vm626, %v815, 0
      %830 = vmatprep.subr.bf16.mxu0 0
      %831 = vmatpush1.bf16.msra.mxu0 0
      %832 = vmatprep.subr.bf16.mxu0 0
      %833 = vmatpush1.bf16.msra.mxu0 0
      %834 = vmatprep.subr.bf16.mxu0 0
      %835 = vmatpush1.bf16.msra.mxu0 0
      %836 = vmatprep.subr.bf16.mxu0 0
      %837 = vmatpush1.bf16.msra.mxu0 0
      %838 = vmatprep.subr.bf16.mxu0 0
      %839 = vmatpush1.bf16.msra.mxu0 0
      %840 = vmatprep.subr.bf16.mxu0 0
      %841 = vmatpush1.bf16.msra.mxu0 0
      %842 = vmatprep.subr.bf16.mxu0 0
      %843 = vmatpush1.bf16.msra.mxu0 0
      %844 = vmatprep.subr.bf16.mxu0 %v828
      %845 = vmatpush1.bf16.msra.mxu0 %v825
      %846 = vmatprep.subr.bf16.mxu0 0
      %847 = vmatpush2.bf16.msra.mxu0 0
      %848 = vmatprep.subr.bf16.mxu0 0
      %849 = vmatpush2.bf16.msra.mxu0 0
      %850 = vmatprep.subr.bf16.mxu0 0
      %851 = vmatpush2.bf16.msra.mxu0 0
      %852 = vmatprep.subr.bf16.mxu0 0
      %853 = vmatpush2.bf16.msra.mxu0 0
      %854 = vmatprep.subr.bf16.mxu0 0
      %855 = vmatpush2.bf16.msra.mxu0 0
      %856 = vmatprep.subr.bf16.mxu0 0
      %857 = vmatpush2.bf16.msra.mxu0 0
      %858 = vmatprep.subr.bf16.mxu0 0
      %859 = vmatpush2.bf16.msra.mxu0 0
      %860 = vmatprep.subr.bf16.mxu0 0
      %861 = vmatpush2.bf16.msra.mxu0 0
      %862 = vmatprep.mubr.bf16.mxu0 0
      %863 = vmatmul.mubr.bf16.gmra.mxu0 %v822
      %v864 = vpop.f32.mrf.mxu0
      %v865 = vadd.f32 %v819, %v864
      %v866 = vpop.f32.mrf.mxu0
      %v867 = vadd.f32 %v819, %v866
      %v868 = vpop.f32.mrf.mxu0
      %v869 = vpop.f32.mrf.mxu0
      %870 = vdwg.mxu0
      %871 = vst [vmem:[%s305] sm:$0xff] %v865
      %872 = vst [vmem:[%s305 + $0x8] sm:$0xff] %v867
      %p873 = scmp.lt.s32.totalorder %s19, 1
      %s874 = scalar_select %p873, %s19, 1
      %s875 = smul.addr %s874, 2
      %s876 = smul.addr %s875, 8
      %s877 = scalar_lea.vmem %s8, %s876
      // Predicated region
      $region53: #{dual_sep_conv.1} parent=51 // pred_check
        %p878 = pneg %p210
      $region54: #{dual_sep_conv.1} parent=51 // pred_check_branch
        %880 = sbr.rel (%p878) target = $region56
      $region55: #{dual_sep_conv.1} parent=51 // pred_region
        _
      $region56: #{dual_sep_conv.1} parent=51 // pred_fallthru
        _
    $region52: #{dual_sep_conv.1} parent=5 // pred_fallthru
      _
    %p881 = scmp.le.s32.totalorder 2, %s14
    // Predicated region
    $region57: #{dual_sep_conv.1} parent=5 // pred_check
      %p882 = pneg %p881
    $region58: #{dual_sep_conv.1} parent=5 // pred_check_branch
      %884 = sbr.rel (%p882) target = $region60
    $region59: #{dual_sep_conv.1} parent=5 // pred_region
      %s885 = ssub.s32 %s14, 2
      // Predicated region
      $region61: #{dual_sep_conv.1} parent=59 // pred_check
        %p886 = pneg %p216
      $region62: #{dual_sep_conv.1} parent=59 // pred_check_branch
        %888 = sbr.rel (%p886) target = $region64
      $region63: #{dual_sep_conv.1} parent=59 // pred_region
        %p889 = scmp.lt.s32.totalorder %s20, 1
        %s890 = scalar_select %p889, %s20, 1
        %s891 = smul.addr %s890, 2
        %s892 = smul.addr %s891, 8
        %s893 = scalar_lea.vmem %s8, %s892
      $region64: #{dual_sep_conv.1} parent=59 // pred_fallthru
        _
    $region60: #{dual_sep_conv.1} parent=5 // pred_fallthru
      _
  $region6: #{dual_sep_conv.1} parent=0 // loop_footer
    %s18 = sadd.s32 1, %s14
  $region7: #{dual_sep_conv.1} parent=0 // loop_footer_branch
    %13 = sbr.rel target = $region3
  $region8: #{dual_sep_conv.1} parent=0 // loop_exit
    _

</llo_original>
